<compile_context>
chip_gen: v7x
topology: tpu7x:2x2x1
jax: 0.10.0
libtpu: 0.0.40
codegen_flags: <defaults>
</compile_context>

<pallas_src>
import functools

import numpy as np
import jax
import jax.numpy as jnp
from jax.experimental import pallas as pl
from jax.experimental.pallas import tpu as pltpu


def _round_up(x, m):
    return ((x + m - 1) // m) * m


# ----------------------------------------------------------------------------
# Pallas kernel 1: fused fc + conv0.  conv0 has a 1x1 spatial input, so the
# whole ConvTranspose2d collapses to a matmul against W0(Cin, K*K*Cout) and
# its bias/ReLU can be applied directly (col2im is the identity here).
#   out = relu( (x @ fc_w + fc_b) @ w0 + b0 )
# ----------------------------------------------------------------------------
def _head_kernel(x_ref, fcw_ref, fcb_ref, w0_ref, b0_ref, o_ref):
    h = jnp.dot(x_ref[...], fcw_ref[...], preferred_element_type=jnp.float32)
    h = h + fcb_ref[...]                                   # nn.Linear bias (f32)
    y = jnp.dot(h.astype(jnp.bfloat16), w0_ref[...],
                preferred_element_type=jnp.float32)
    o_ref[...] = jnp.maximum(y + b0_ref[...], 0.0)         # conv0 bias + ReLU


def head_gemm(x, fc_w, fc_b, w0, b0):
    B, din = x.shape
    F = fc_w.shape[1]
    Np = w0.shape[1]
    Mp = _round_up(B, 8)
    if Mp != B:
        x = jnp.pad(x, ((0, Mp - B), (0, 0)))
    out = pl.pallas_call(
        _head_kernel,
        out_shape=jax.ShapeDtypeStruct((Mp, Np), jnp.float32),
        grid_spec=pltpu.PrefetchScalarGridSpec(
            num_scalar_prefetch=0,
            grid=(1,),
            in_specs=[pl.BlockSpec((Mp, din), lambda i: (0, 0)),
                      pl.BlockSpec((din, F), lambda i: (0, 0)),
                      pl.BlockSpec((1, F), lambda i: (0, 0)),
                      pl.BlockSpec((F, Np), lambda i: (0, 0)),
                      pl.BlockSpec((1, Np), lambda i: (0, 0))],
            out_specs=pl.BlockSpec((Mp, Np), lambda i: (0, 0))),
        compiler_params=pltpu.CompilerParams(
            dimension_semantics=("arbitrary",)),
    )(x, fc_w, fc_b, w0, b0)
    return out[:B]


# ----------------------------------------------------------------------------
# Pallas kernel 2: deconv GEMM with the previous layer's bias+ReLU fused as a
# pre-activation (ReLU is a no-op when the input is already activated and the
# bias passed is zero).  Output N is padded to a multiple of 128 so the store
# is lane-dense (unmasked vst).
#   y = relu(x + b_prev) @ w
# ----------------------------------------------------------------------------
def _deconv_gemm_kernel(x_ref, b_ref, w_ref, o_ref):
    x = jnp.maximum(x_ref[...].astype(jnp.float32) + b_ref[...], 0.0)
    o_ref[...] = jnp.dot(x.astype(jnp.bfloat16), w_ref[...],
                         preferred_element_type=jnp.float32)


def deconv_gemm(x, b_prev, w, *, max_rows_per_block=1024):
    M, cin = x.shape
    _, Np = w.shape
    nblk = -(-M // max_rows_per_block)                 # ceil; 1 for small layers
    bm = _round_up(-(-M // nblk), 16)                  # bf16 sublane-tile aligned
    Mp = bm * nblk
    if Mp != M:
        x = jnp.pad(x, ((0, Mp - M), (0, 0)))          # tiny; fuses with the cast
    out = pl.pallas_call(
        _deconv_gemm_kernel,
        out_shape=jax.ShapeDtypeStruct((Mp, Np), jnp.float32),
        grid_spec=pltpu.PrefetchScalarGridSpec(
            num_scalar_prefetch=0,
            grid=(nblk,),
            in_specs=[pl.BlockSpec((bm, cin), lambda i: (i, 0)),
                      pl.BlockSpec((1, cin), lambda i: (0, 0)),
                      pl.BlockSpec((cin, Np), lambda i: (0, 0))],
            out_specs=pl.BlockSpec((bm, Np), lambda i: (i, 0))),
        compiler_params=pltpu.CompilerParams(
            dimension_semantics=("parallel",)),        # conv3: 2 blocks -> 2 TCs on v7x
    )(x, b_prev, w)
    return out[:M]


# ----------------------------------------------------------------------------
# col2im for the transposed convolution (XLA data-movement glue, no scatters):
# accumulate per output "phase" (oy % s, ox % s) with contiguous padded adds,
# then interleave the phases with one transpose + reshape.
# ----------------------------------------------------------------------------
def _col2im(y_cols, B, H, W, K, C, s):
    y = y_cols.reshape(B, H, W, K, K, C)
    Ho = (H - 1) * s + K
    Wo = (W - 1) * s + K
    Hp = -(-Ho // s)
    Wp = -(-Wo // s)
    phase_rows = []
    for ry in range(s):
        phase_cols = []
        for rx in range(s):
            acc = jnp.zeros((B, Hp, Wp, C), jnp.float32)
            for ky in range(ry, K, s):
                jy = (ky - ry) // s
                for kx in range(rx, K, s):
                    jx = (kx - rx) // s
                    acc = acc + jnp.pad(
                        y[:, :, :, ky, kx, :],
                        ((0, 0), (jy, Hp - H - jy), (jx, Wp - W - jx), (0, 0)))
            phase_cols.append(acc)
        phase_rows.append(jnp.stack(phase_cols, 0))
    ph = jnp.stack(phase_rows, 0)                       # (s, s, B, Hp, Wp, C)
    out = jnp.transpose(ph, (2, 3, 0, 4, 1, 5))         # (B, Hp, s, Wp, s, C)
    out = out.reshape(B, s * Hp, s * Wp, C)
    return out[:, :Ho, :Wo, :]


# ----------------------------------------------------------------------------
# Parameter packing (done once, outside the jitted forward): reorganize the
# PyTorch ConvTranspose2d weights (Cin, Cout, K, K) into lane-dense bf16
# GEMM weights (Cin padded to 8, K*K*Cout padded to a multiple of 128).
# ----------------------------------------------------------------------------
def pack_params(params, *, depth, kernel_size):
    p = {k: jnp.asarray(v) for k, v in params.items()}
    packed = {}
    packed["fc_w"] = p["fc_w"].astype(jnp.bfloat16)
    packed["fc_b"] = p["fc_b"].reshape(1, -1).astype(jnp.float32)

    def reorg(w):
        cin, cout, kk, _ = w.shape
        n = kk * kk * cout
        wr = jnp.transpose(w, (0, 2, 3, 1)).reshape(cin, n)   # [ci, (ky*K+kx)*Cout+co]
        wr = jnp.pad(wr, ((0, _round_up(cin, 8) - cin),
                          (0, _round_up(n, 128) - n)))
        return wr.astype(jnp.bfloat16)

    for i in range(4):
        packed[f"w{i}"] = reorg(p[f"conv{i}_w"])

    k0 = kernel_size
    n0 = packed["w0"].shape[1]
    b0 = jnp.tile(p["conv0_b"].astype(jnp.float32), k0 * k0)   # per-tap bias layout
    packed["b0"] = jnp.pad(b0, (0, n0 - b0.shape[0])).reshape(1, n0)

    def pre_bias(b):
        b = b.astype(jnp.float32)
        return jnp.pad(b, (0, _round_up(b.shape[0], 8) - b.shape[0])).reshape(1, -1)

    packed["pre_b1"] = pre_bias(jnp.zeros((depth * 4,), jnp.float32))  # conv0 b/ReLU already applied
    packed["pre_b2"] = pre_bias(p["conv1_b"])
    packed["pre_b3"] = pre_bias(p["conv2_b"])
    packed["post_b"] = p["conv3_b"].astype(jnp.float32).reshape(1, 1, 1, -1)
    return packed


# ----------------------------------------------------------------------------
# Full forward pass (returns the Gaussian mean; std is the constant 1)
# ----------------------------------------------------------------------------
def pixel_decoder_forward(packed, deter_h, stoch_z, *, depth, kernel_size,
                          stride, obs_channels):
    B = deter_h.shape[0]
    k0 = kernel_size
    c0 = depth * 4
    x0 = jnp.concatenate([deter_h, stoch_z], axis=-1).astype(jnp.bfloat16)

    # nn.Linear + ConvTranspose2d #0 (1x1 input) + ReLU, fused in one kernel.
    y0 = head_gemm(x0, packed["fc_w"], packed["fc_b"], packed["w0"], packed["b0"])
    x = y0[:, :k0 * k0 * c0].reshape(B, k0, k0, c0)            # NHWC, activated

    layer_cfg = [
        ("w1", "pre_b1", kernel_size,     depth * 2),
        ("w2", "pre_b2", kernel_size + 1, depth),
        ("w3", "pre_b3", kernel_size + 1, obs_channels),       # final: no ReLU
    ]
    for wname, bname, K, cout in layer_cfg:
        _, H, W, cin = x.shape
        cin_p = packed[wname].shape[0]
        x2d = x.reshape(B * H * W, cin).astype(jnp.bfloat16)
        if cin_p != cin:
            x2d = jnp.pad(x2d, ((0, 0), (0, cin_p - cin)))
        y = deconv_gemm(x2d, packed[bname], packed[wname])      # Pallas hot path
        x = _col2im(y[:, :K * K * cout], B, H, W, K, cout, stride)

    mean = x + packed["post_b"]                                 # conv3 bias, no ReLU
    # TODO(synk): torch.distributions.Independent(Normal(mean, 1)) has no Pallas
    # equivalent; the kernel returns the Gaussian mean (std is fixed to 1).
    return jnp.transpose(mean, (0, 3, 1, 2))                    # NHWC -> NCHW


# ----------------------------------------------------------------------------
# Numpy reference (PyTorch ConvTranspose2d semantics) with the same bf16
# operand rounding the kernels apply, so tolerances can stay tight.
# ----------------------------------------------------------------------------
def _bf16(a):
    return np.asarray(jnp.asarray(a, jnp.float32).astype(jnp.bfloat16)
                      .astype(jnp.float32))


def _np_conv_transpose(x, w, stride):
    B, Cin, H, W = x.shape
    _, Cout, K, _ = w.shape
    Ho = (H - 1) * stride + K
    Wo = (W - 1) * stride + K
    out = np.zeros((B, Cout, Ho, Wo), np.float32)
    for h in range(H):
        for ww in range(W):
            out[:, :, h * stride:h * stride + K, ww * stride:ww * stride + K] += \
                np.einsum("bc,cokl->bokl", x[:, :, h, ww], w)
    return out


def ref_forward_np(params, deter_h, stoch_z, *, depth, kernel_size, stride):
    p = {k: np.asarray(v, np.float32) for k, v in params.items()}
    x = np.concatenate([np.asarray(deter_h, np.float32),
                        np.asarray(stoch_z, np.float32)], axis=-1)
    h = _bf16(x) @ _bf16(p["fc_w"]) + p["fc_b"]
    x = _np_conv_transpose(_bf16(h).reshape(-1, depth * 32, 1, 1),
                           _bf16(p["conv0_w"]), stride)
    x = np.maximum(x + p["conv0_b"][None, :, None, None], 0.0)
    x = _np_conv_transpose(_bf16(x), _bf16(p["conv1_w"]), stride)
    x = _bf16(np.maximum(_bf16(x) + p["conv1_b"][None, :, None, None], 0.0))
    x = _np_conv_transpose(x, _bf16(p["conv2_w"]), stride)
    x = _bf16(np.maximum(_bf16(x) + p["conv2_b"][None, :, None, None], 0.0))
    x = _np_conv_transpose(x, _bf16(p["conv3_w"]), stride)
    return x + p["conv3_b"][None, :, None, None]


# ----------------------------------------------------------------------------
if __name__ == "__main__":
    # small, Dreamer-like config
    B = 2
    DETER, STOCH = 16, 16
    DEPTH, KSIZE, STRIDE = 4, 5, 2
    OBS_SHAPE = (3, 64, 64)    # (1-1)*2+5=5 -> 13 -> 30 -> 64

    key = jax.random.PRNGKey(0)
    k = list(jax.random.split(key, 16))

    params = {}
    in_f, out_f = DETER + STOCH, DEPTH * 32
    params["fc_w"] = jax.random.normal(k[0], (in_f, out_f), jnp.float32) / np.sqrt(in_f)
    params["fc_b"] = 0.1 * jax.random.normal(k[1], (out_f,), jnp.float32)

    conv_defs = [
        (DEPTH * 32, DEPTH * 4, KSIZE),
        (DEPTH * 4, DEPTH * 2, KSIZE),
        (DEPTH * 2, DEPTH, KSIZE + 1),
        (DEPTH, OBS_SHAPE[0], KSIZE + 1),
    ]
    for li, (cin, cout, kk) in enumerate(conv_defs):
        params[f"conv{li}_w"] = jax.random.normal(
            k[2 + 2 * li], (cin, cout, kk, kk), jnp.float32) / np.sqrt(cin * kk * kk)
        params[f"conv{li}_b"] = 0.1 * jax.random.normal(k[3 + 2 * li], (cout,), jnp.float32)

    deter_h = jax.random.normal(k[14], (B, DETER), jnp.float32)
    stoch_z = jax.random.normal(k[15], (B, STOCH), jnp.float32)

    packed = pack_params(params, depth=DEPTH, kernel_size=KSIZE)
    fwd = jax.jit(functools.partial(
        pixel_decoder_forward, depth=DEPTH, kernel_size=KSIZE, stride=STRIDE,
        obs_channels=OBS_SHAPE[0]))

    mean = jax.block_until_ready(fwd(packed, deter_h, stoch_z))
    assert mean.shape == (B,) + OBS_SHAPE, mean.shape

    ref = ref_forward_np(params, deter_h, stoch_z,
                         depth=DEPTH, kernel_size=KSIZE, stride=STRIDE)
    np.testing.assert_allclose(np.asarray(mean), ref, rtol=1e-2, atol=1e-2)

    print("KERNEL_OK")
</pallas_src>

<mosaic_0001>
module attributes {stable_mosaic.version = 11 : i64} {
  func.func @_head_kernel(%arg0: i32, %arg1: memref<8x32xbf16, #tpu.memory_space<vmem>>, %arg2: memref<32x128xbf16, #tpu.memory_space<vmem>>, %arg3: memref<1x128xf32, #tpu.memory_space<vmem>>, %arg4: memref<128x512xbf16, #tpu.memory_space<vmem>>, %arg5: memref<1x512xf32, #tpu.memory_space<vmem>>, %arg6: memref<8x512xf32, #tpu.memory_space<vmem>>) attributes {dimension_semantics = [#tpu.dimension_semantics<arbitrary>], iteration_bounds = array<i64: 1>, scalar_prefetch = 0 : i64, scratch_operands = 0 : i64, tpu.core_type = #tpu.core_type<tc>, window_params = [{pipeline_mode = #tpu.pipeline_mode<synchronous>, transform_indices = @transform_0, window_bounds = array<i64: 8, 32>}, {pipeline_mode = #tpu.pipeline_mode<synchronous>, transform_indices = @transform_1, window_bounds = array<i64: 32, 128>}, {pipeline_mode = #tpu.pipeline_mode<synchronous>, transform_indices = @transform_2, window_bounds = array<i64: 1, 128>}, {pipeline_mode = #tpu.pipeline_mode<synchronous>, transform_indices = @transform_3, window_bounds = array<i64: 128, 512>}, {pipeline_mode = #tpu.pipeline_mode<synchronous>, transform_indices = @transform_4, window_bounds = array<i64: 1, 512>}, {pipeline_mode = #tpu.pipeline_mode<synchronous>, transform_indices = @transform_5, window_bounds = array<i64: 8, 512>}]} {
    %c0 = arith.constant 0 : index
    %c0_0 = arith.constant 0 : index
    %0 = vector.load %arg1[%c0, %c0_0] : memref<8x32xbf16, #tpu.memory_space<vmem>>, vector<8x32xbf16>
    %c0_1 = arith.constant 0 : index
    %c0_2 = arith.constant 0 : index
    %1 = vector.load %arg2[%c0_1, %c0_2] : memref<32x128xbf16, #tpu.memory_space<vmem>>, vector<32x128xbf16>
    %cst = arith.constant dense<0.000000e+00> : vector<8x128xf32>
    %2 = tpu.matmul %0, %1, %cst {dimension_numbers = #tpu.dot_dimension_numbers<[1], [0], [0], [1], [0, 0, 1, 1], [], []>} : vector<8x32xbf16>, vector<32x128xbf16>, vector<8x128xf32> -> vector<8x128xf32>
    %c0_3 = arith.constant 0 : index
    %c0_4 = arith.constant 0 : index
    %3 = vector.load %arg3[%c0_3, %c0_4] : memref<1x128xf32, #tpu.memory_space<vmem>>, vector<1x128xf32>
    %4 = vector.broadcast %3 : vector<1x128xf32> to vector<8x128xf32>
    %5 = arith.addf %2, %4 : vector<8x128xf32>
    %6 = arith.truncf %5 : vector<8x128xf32> to vector<8x128xbf16>
    %c0_5 = arith.constant 0 : index
    %c0_6 = arith.constant 0 : index
    %7 = vector.load %arg4[%c0_5, %c0_6] : memref<128x512xbf16, #tpu.memory_space<vmem>>, vector<128x512xbf16>
    %cst_7 = arith.constant dense<0.000000e+00> : vector<8x512xf32>
    %8 = tpu.matmul %6, %7, %cst_7 {dimension_numbers = #tpu.dot_dimension_numbers<[1], [0], [0], [1], [0, 0, 1, 1], [], []>} : vector<8x128xbf16>, vector<128x512xbf16>, vector<8x512xf32> -> vector<8x512xf32>
    %c0_8 = arith.constant 0 : index
    %c0_9 = arith.constant 0 : index
    %9 = vector.load %arg5[%c0_8, %c0_9] : memref<1x512xf32, #tpu.memory_space<vmem>>, vector<1x512xf32>
    %10 = vector.broadcast %9 : vector<1x512xf32> to vector<8x512xf32>
    %11 = arith.addf %8, %10 : vector<8x512xf32>
    %cst_10 = arith.constant 0.000000e+00 : f32
    %12 = vector.broadcast %cst_10 : f32 to vector<8x512xf32>
    %13 = arith.maximumf %11, %12 : vector<8x512xf32>
    %c0_11 = arith.constant 0 : index
    %c0_12 = arith.constant 0 : index
    %14 = vector.load %arg6[%c0_11, %c0_12] : memref<8x512xf32, #tpu.memory_space<vmem>>, vector<8x512xf32>
    tpu.vector_store %arg6[%c0_11, %c0_12], %13 {strides = array<i32>} : memref<8x512xf32, #tpu.memory_space<vmem>>, vector<8x512xf32>,
    return
  }
  func.func @transform_0(%arg0: i32) -> (i32, i32) {
    %c0_i32 = arith.constant 0 : i32
    %c0_i32_0 = arith.constant 0 : i32
    %c0_i32_1 = arith.constant 0 : i32
    return %c0_i32, %c0_i32_0 : i32, i32
  }
  func.func @transform_1(%arg0: i32) -> (i32, i32) {
    %c0_i32 = arith.constant 0 : i32
    %c0_i32_0 = arith.constant 0 : i32
    %c0_i32_1 = arith.constant 0 : i32
    return %c0_i32, %c0_i32_0 : i32, i32
  }
  func.func @transform_2(%arg0: i32) -> (i32, i32) {
    %c0_i32 = arith.constant 0 : i32
    %c0_i32_0 = arith.constant 0 : i32
    %c0_i32_1 = arith.constant 0 : i32
    return %c0_i32, %c0_i32_0 : i32, i32
  }
  func.func @transform_3(%arg0: i32) -> (i32, i32) {
    %c0_i32 = arith.constant 0 : i32
    %c0_i32_0 = arith.constant 0 : i32
    %c0_i32_1 = arith.constant 0 : i32
    return %c0_i32, %c0_i32_0 : i32, i32
  }
  func.func @transform_4(%arg0: i32) -> (i32, i32) {
    %c0_i32 = arith.constant 0 : i32
    %c0_i32_0 = arith.constant 0 : i32
    %c0_i32_1 = arith.constant 0 : i32
    return %c0_i32, %c0_i32_0 : i32, i32
  }
  func.func @transform_5(%arg0: i32) -> (i32, i32) {
    %c0_i32 = arith.constant 0 : i32
    %c0_i32_0 = arith.constant 0 : i32
    %c0_i32_1 = arith.constant 0 : i32
    return %c0_i32, %c0_i32_0 : i32, i32
  }
}

module attributes {stable_mosaic.version = 11 : i64} {
  func.func @_deconv_gemm_kernel(%arg0: i32, %arg1: memref<64x16xbf16, #tpu.memory_space<vmem>>, %arg2: memref<1x16xf32, #tpu.memory_space<vmem>>, %arg3: memref<16x256xbf16, #tpu.memory_space<vmem>>, %arg4: memref<64x256xf32, #tpu.memory_space<vmem>>) attributes {dimension_semantics = [#tpu.dimension_semantics<parallel>], iteration_bounds = array<i64: 1>, scalar_prefetch = 0 : i64, scratch_operands = 0 : i64, tpu.core_type = #tpu.core_type<tc>, window_params = [{transform_indices = @transform_0, window_bounds = array<i64: 64, 16>}, {pipeline_mode = #tpu.pipeline_mode<synchronous>, transform_indices = @transform_1, window_bounds = array<i64: 1, 16>}, {pipeline_mode = #tpu.pipeline_mode<synchronous>, transform_indices = @transform_2, window_bounds = array<i64: 16, 256>}, {transform_indices = @transform_3, window_bounds = array<i64: 64, 256>}]} {
    %c0 = arith.constant 0 : index
    %c0_0 = arith.constant 0 : index
    %0 = vector.load %arg1[%c0, %c0_0] : memref<64x16xbf16, #tpu.memory_space<vmem>>, vector<64x16xbf16>
    %1 = arith.extf %0 : vector<64x16xbf16> to vector<64x16xf32>
    %c0_1 = arith.constant 0 : index
    %c0_2 = arith.constant 0 : index
    %2 = vector.load %arg2[%c0_1, %c0_2] : memref<1x16xf32, #tpu.memory_space<vmem>>, vector<1x16xf32>
    %3 = vector.broadcast %2 : vector<1x16xf32> to vector<64x16xf32>
    %4 = arith.addf %1, %3 : vector<64x16xf32>
    %cst = arith.constant 0.000000e+00 : f32
    %5 = vector.broadcast %cst : f32 to vector<64x16xf32>
    %6 = arith.maximumf %4, %5 : vector<64x16xf32>
    %7 = arith.truncf %6 : vector<64x16xf32> to vector<64x16xbf16>
    %c0_3 = arith.constant 0 : index
    %c0_4 = arith.constant 0 : index
    %8 = vector.load %arg3[%c0_3, %c0_4] : memref<16x256xbf16, #tpu.memory_space<vmem>>, vector<16x256xbf16>
    %cst_5 = arith.constant dense<0.000000e+00> : vector<64x256xf32>
    %9 = tpu.matmul %7, %8, %cst_5 {dimension_numbers = #tpu.dot_dimension_numbers<[1], [0], [0], [1], [0, 0, 1, 1], [], []>} : vector<64x16xbf16>, vector<16x256xbf16>, vector<64x256xf32> -> vector<64x256xf32>
    %c0_6 = arith.constant 0 : index
    %c0_7 = arith.constant 0 : index
    %10 = vector.load %arg4[%c0_6, %c0_7] : memref<64x256xf32, #tpu.memory_space<vmem>>, vector<64x256xf32>
    tpu.vector_store %arg4[%c0_6, %c0_7], %9 {strides = array<i32>} : memref<64x256xf32, #tpu.memory_space<vmem>>, vector<64x256xf32>,
    return
  }
  func.func @transform_0(%arg0: i32) -> (i32, i32) {
    %c0_i32 = arith.constant 0 : i32
    %c0_i32_0 = arith.constant 0 : i32
    return %arg0, %c0_i32 : i32, i32
  }
  func.func @transform_1(%arg0: i32) -> (i32, i32) {
    %c0_i32 = arith.constant 0 : i32
    %c0_i32_0 = arith.constant 0 : i32
    %c0_i32_1 = arith.constant 0 : i32
    return %c0_i32, %c0_i32_0 : i32, i32
  }
  func.func @transform_2(%arg0: i32) -> (i32, i32) {
    %c0_i32 = arith.constant 0 : i32
    %c0_i32_0 = arith.constant 0 : i32
    %c0_i32_1 = arith.constant 0 : i32
    return %c0_i32, %c0_i32_0 : i32, i32
  }
  func.func @transform_3(%arg0: i32) -> (i32, i32) {
    %c0_i32 = arith.constant 0 : i32
    %c0_i32_0 = arith.constant 0 : i32
    return %arg0, %c0_i32 : i32, i32
  }
}

module attributes {stable_mosaic.version = 11 : i64} {
  func.func @_deconv_gemm_kernel(%arg0: i32, %arg1: memref<352x8xbf16, #tpu.memory_space<vmem>>, %arg2: memref<1x8xf32, #tpu.memory_space<vmem>>, %arg3: memref<8x256xbf16, #tpu.memory_space<vmem>>, %arg4: memref<352x256xf32, #tpu.memory_space<vmem>>) attributes {dimension_semantics = [#tpu.dimension_semantics<parallel>], iteration_bounds = array<i64: 1>, scalar_prefetch = 0 : i64, scratch_operands = 0 : i64, tpu.core_type = #tpu.core_type<tc>, window_params = [{transform_indices = @transform_0, window_bounds = array<i64: 352, 8>}, {pipeline_mode = #tpu.pipeline_mode<synchronous>, transform_indices = @transform_1, window_bounds = array<i64: 1, 8>}, {pipeline_mode = #tpu.pipeline_mode<synchronous>, transform_indices = @transform_2, window_bounds = array<i64: 8, 256>}, {transform_indices = @transform_3, window_bounds = array<i64: 352, 256>}]} {
    %c0 = arith.constant 0 : index
    %c0_0 = arith.constant 0 : index
    %0 = vector.load %arg1[%c0, %c0_0] : memref<352x8xbf16, #tpu.memory_space<vmem>>, vector<352x8xbf16>
    %1 = arith.extf %0 : vector<352x8xbf16> to vector<352x8xf32>
    %c0_1 = arith.constant 0 : index
    %c0_2 = arith.constant 0 : index
    %2 = vector.load %arg2[%c0_1, %c0_2] : memref<1x8xf32, #tpu.memory_space<vmem>>, vector<1x8xf32>
    %3 = vector.broadcast %2 : vector<1x8xf32> to vector<352x8xf32>
    %4 = arith.addf %1, %3 : vector<352x8xf32>
    %cst = arith.constant 0.000000e+00 : f32
    %5 = vector.broadcast %cst : f32 to vector<352x8xf32>
    %6 = arith.maximumf %4, %5 : vector<352x8xf32>
    %7 = arith.truncf %6 : vector<352x8xf32> to vector<352x8xbf16>
    %c0_3 = arith.constant 0 : index
    %c0_4 = arith.constant 0 : index
    %8 = vector.load %arg3[%c0_3, %c0_4] : memref<8x256xbf16, #tpu.memory_space<vmem>>, vector<8x256xbf16>
    %cst_5 = arith.constant dense<0.000000e+00> : vector<352x256xf32>
    %9 = tpu.matmul %7, %8, %cst_5 {dimension_numbers = #tpu.dot_dimension_numbers<[1], [0], [0], [1], [0, 0, 1, 1], [], []>} : vector<352x8xbf16>, vector<8x256xbf16>, vector<352x256xf32> -> vector<352x256xf32>
    %c0_6 = arith.constant 0 : index
    %c0_7 = arith.constant 0 : index
    %10 = vector.load %arg4[%c0_6, %c0_7] : memref<352x256xf32, #tpu.memory_space<vmem>>, vector<352x256xf32>
    tpu.vector_store %arg4[%c0_6, %c0_7], %9 {strides = array<i32>} : memref<352x256xf32, #tpu.memory_space<vmem>>, vector<352x256xf32>,
    return
  }
  func.func @transform_0(%arg0: i32) -> (i32, i32) {
    %c0_i32 = arith.constant 0 : i32
    %c0_i32_0 = arith.constant 0 : i32
    return %arg0, %c0_i32 : i32, i32
  }
  func.func @transform_1(%arg0: i32) -> (i32, i32) {
    %c0_i32 = arith.constant 0 : i32
    %c0_i32_0 = arith.constant 0 : i32
    %c0_i32_1 = arith.constant 0 : i32
    return %c0_i32, %c0_i32_0 : i32, i32
  }
  func.func @transform_2(%arg0: i32) -> (i32, i32) {
    %c0_i32 = arith.constant 0 : i32
    %c0_i32_0 = arith.constant 0 : i32
    %c0_i32_1 = arith.constant 0 : i32
    return %c0_i32, %c0_i32_0 : i32, i32
  }
  func.func @transform_3(%arg0: i32) -> (i32, i32) {
    %c0_i32 = arith.constant 0 : i32
    %c0_i32_0 = arith.constant 0 : i32
    return %arg0, %c0_i32 : i32, i32
  }
}

module attributes {stable_mosaic.version = 11 : i64} {
  func.func @_deconv_gemm_kernel(%arg0: i32, %arg1: memref<912x8xbf16, #tpu.memory_space<vmem>>, %arg2: memref<1x8xf32, #tpu.memory_space<vmem>>, %arg3: memref<8x128xbf16, #tpu.memory_space<vmem>>, %arg4: memref<912x128xf32, #tpu.memory_space<vmem>>) attributes {dimension_semantics = [#tpu.dimension_semantics<parallel>], iteration_bounds = array<i64: 2>, scalar_prefetch = 0 : i64, scratch_operands = 0 : i64, tpu.core_type = #tpu.core_type<tc>, window_params = [{transform_indices = @transform_0, window_bounds = array<i64: 912, 8>}, {pipeline_mode = #tpu.pipeline_mode<synchronous>, transform_indices = @transform_1, window_bounds = array<i64: 1, 8>}, {pipeline_mode = #tpu.pipeline_mode<synchronous>, transform_indices = @transform_2, window_bounds = array<i64: 8, 128>}, {transform_indices = @transform_3, window_bounds = array<i64: 912, 128>}]} {
    %c0 = arith.constant 0 : index
    %c0_0 = arith.constant 0 : index
    %0 = vector.load %arg1[%c0, %c0_0] : memref<912x8xbf16, #tpu.memory_space<vmem>>, vector<912x8xbf16>
    %1 = arith.extf %0 : vector<912x8xbf16> to vector<912x8xf32>
    %c0_1 = arith.constant 0 : index
    %c0_2 = arith.constant 0 : index
    %2 = vector.load %arg2[%c0_1, %c0_2] : memref<1x8xf32, #tpu.memory_space<vmem>>, vector<1x8xf32>
    %3 = vector.broadcast %2 : vector<1x8xf32> to vector<912x8xf32>
    %4 = arith.addf %1, %3 : vector<912x8xf32>
    %cst = arith.constant 0.000000e+00 : f32
    %5 = vector.broadcast %cst : f32 to vector<912x8xf32>
    %6 = arith.maximumf %4, %5 : vector<912x8xf32>
    %7 = arith.truncf %6 : vector<912x8xf32> to vector<912x8xbf16>
    %c0_3 = arith.constant 0 : index
    %c0_4 = arith.constant 0 : index
    %8 = vector.load %arg3[%c0_3, %c0_4] : memref<8x128xbf16, #tpu.memory_space<vmem>>, vector<8x128xbf16>
    %cst_5 = arith.constant dense<0.000000e+00> : vector<912x128xf32>
    %9 = tpu.matmul %7, %8, %cst_5 {dimension_numbers = #tpu.dot_dimension_numbers<[1], [0], [0], [1], [0, 0, 1, 1], [], []>} : vector<912x8xbf16>, vector<8x128xbf16>, vector<912x128xf32> -> vector<912x128xf32>
    %c0_6 = arith.constant 0 : index
    %c0_7 = arith.constant 0 : index
    %10 = vector.load %arg4[%c0_6, %c0_7] : memref<912x128xf32, #tpu.memory_space<vmem>>, vector<912x128xf32>
    tpu.vector_store %arg4[%c0_6, %c0_7], %9 {strides = array<i32>} : memref<912x128xf32, #tpu.memory_space<vmem>>, vector<912x128xf32>,
    return
  }
  func.func @transform_0(%arg0: i32) -> (i32, i32) {
    %c0_i32 = arith.constant 0 : i32
    %c0_i32_0 = arith.constant 0 : i32
    return %arg0, %c0_i32 : i32, i32
  }
  func.func @transform_1(%arg0: i32) -> (i32, i32) {
    %c0_i32 = arith.constant 0 : i32
    %c0_i32_0 = arith.constant 0 : i32
    %c0_i32_1 = arith.constant 0 : i32
    return %c0_i32, %c0_i32_0 : i32, i32
  }
  func.func @transform_2(%arg0: i32) -> (i32, i32) {
    %c0_i32 = arith.constant 0 : i32
    %c0_i32_0 = arith.constant 0 : i32
    %c0_i32_1 = arith.constant 0 : i32
    return %c0_i32, %c0_i32_0 : i32, i32
  }
  func.func @transform_3(%arg0: i32) -> (i32, i32) {
    %c0_i32 = arith.constant 0 : i32
    %c0_i32_0 = arith.constant 0 : i32
    return %arg0, %c0_i32 : i32, i32
  }
}

</mosaic_0001>

<llo_original>
// kernel: pixel_decoder_forward.5
$region0: #{pixel_decoder_forward.5}
  #allocation0 [shape = 'u32[]', space=smem, size = 0x4, offset = 0x4, fixed_abs, tag = 'smem constant byte address 0x4 - core index']
  #allocation1 [shape = 'u32[144,128]{1,0:T(1,128)}', space=vmem, size = 0x12000, scoped, tag = 'internal scratch']
  %s0 = inlined_call_operand.vmem [shape: bf16[64,16], index: 0, kind: input, shape index: {}]
  %s1 = inlined_call_operand.hbm [shape: f32[1,16], index: 1, kind: input, shape index: {}]
  %s2 = inlined_call_operand.hbm [shape: bf16[16,256], index: 2, kind: input, shape index: {}]
  %s3 = inlined_call_operand.vmem [shape: f32[64,256], index: 3, kind: output, shape index: {}]
  %s4 = sld [smem:[#allocation0]]
  $region30: #{pixel_decoder_forward.5} parent=0
    _
  %s6 = ssub.s32 1, %s4
  %s7 = scalar_select 0, %s6, %s4
  $region1: #{pixel_decoder_forward.5} parent=0
    #allocation2 [shape = 'u8[512]{0}', space=vmem, size = 0x400, scoped, tag = 'input window, operand 1, single buffered']
    #allocation3 [shape = 's32[1]{0}', space=sflag, size = 0x4, scoped, tag = 'scoped memory for pixel_decoder_forward.5']
    #allocation4 [shape = 'u8[8192]{0}', space=vmem, size = 0x2000, scoped, tag = 'input window, operand 2, single buffered']
    #allocation5 [shape = 's32[1]{0}', space=sflag, size = 0x4, scoped, tag = 'scoped memory for pixel_decoder_forward.5']
    %8 = vsyncpa [#allocation3], 0
    %9 = vsyncpa [#allocation5], 0
    // Predicated region
    $region2: #{pixel_decoder_forward.5} parent=1 // pred_check
      _
    $region3: #{pixel_decoder_forward.5} parent=1 // pred_check_branch
      %11 = sbr.rel (0) target = $region5
    $region4: #{pixel_decoder_forward.5} parent=1 // pred_region
      _
    $region5: #{pixel_decoder_forward.5} parent=1 // pred_fallthru
      _
    // Predicated region
    $region6: #{pixel_decoder_forward.5} parent=1 // pred_check
      _
    $region7: #{pixel_decoder_forward.5} parent=1 // pred_check_branch
      %13 = sbr.rel (0) target = $region9
    $region8: #{pixel_decoder_forward.5} parent=1 // pred_region
      %s15 = ssub.s32 16, 16
      %16 = vsyncadd [#allocation3], %s15
      %s18 = sshll.u32 [#allocation2], 4
      %s19 = int_to_ptr.vmem [resolvable:$true] %s18
      %21 = dma.hbm_to_vmem [thread:$0]  %s1, 16, %s19, [#allocation3]
    $region9: #{pixel_decoder_forward.5} parent=1 // pred_fallthru
      _
    // Predicated region
    $region10: #{pixel_decoder_forward.5} parent=1 // pred_check
      _
    $region11: #{pixel_decoder_forward.5} parent=1 // pred_check_branch
      %23 = sbr.rel (0) target = $region13
    $region12: #{pixel_decoder_forward.5} parent=1 // pred_region
      %s25 = ssub.s32 256, 256
      %26 = vsyncadd [#allocation5], %s25
      %s27 = sshll.u32 [#allocation4], 4
      %s28 = int_to_ptr.vmem [resolvable:$true] %s27
      %33 = dma.hbm_to_vmem [thread:$0]  %s2, 256, %s28, [#allocation5], 128, 128, 8
    $region13: #{pixel_decoder_forward.5} parent=1 // pred_fallthru
      _
    // Predicated region
    $region14: #{pixel_decoder_forward.5} parent=1 // pred_check
      _
    $region15: #{pixel_decoder_forward.5} parent=1 // pred_check_branch
      %35 = sbr.rel (0) target = $region17
    $region16: #{pixel_decoder_forward.5} parent=1 // pred_region
      %36 = dma.done [#allocation3], 16
    $region17: #{pixel_decoder_forward.5} parent=1 // pred_fallthru
      _
    // Predicated region
    $region18: #{pixel_decoder_forward.5} parent=1 // pred_check
      _
    $region19: #{pixel_decoder_forward.5} parent=1 // pred_check_branch
      %38 = sbr.rel (0) target = $region21
    $region20: #{pixel_decoder_forward.5} parent=1 // pred_region
      %39 = dma.done [#allocation5], 256
    $region21: #{pixel_decoder_forward.5} parent=1 // pred_fallthru
      _
    %v41 = vld [vmem:[%s0] sm:$0xf]
    %v42 = vld [vmem:[%s0 + $0x4] sm:$0xf]
    %v43 = vld [vmem:[%s0 + $0x8] sm:$0xf]
    %v44 = vld [vmem:[%s0 + $0xc] sm:$0xf]
    %v45 = vld [vmem:[%s0 + $0x10] sm:$0xf]
    %v46 = vld [vmem:[%s0 + $0x14] sm:$0xf]
    %v47 = vld [vmem:[%s0 + $0x18] sm:$0xf]
    %v48 = vld [vmem:[%s0 + $0x1c] sm:$0xf]
    %v49 = vunpack.c.l.bf16 %v41
    %v50 = vunpack.c.l.bf16 %v42
    %v51 = vunpack.c.l.bf16 %v43
    %v52 = vunpack.c.l.bf16 %v44
    %v53 = vunpack.c.l.bf16 %v45
    %v54 = vunpack.c.l.bf16 %v46
    %v55 = vunpack.c.l.bf16 %v47
    %v56 = vunpack.c.l.bf16 %v48
    %v57 = vld [vmem:[#allocation2] sm:$0x1]
    %v59 = vlaneseq
    %v60 = vshrl.u32 %v59, 7
    %v61 = vsub.s32 0, %v60
    %v62 = vrot.slane %v57, %v61
    %v64 = vadd.f32 %v49, %v62
    %v65 = vadd.f32 %v50, %v62
    %v66 = vadd.f32 %v51, %v62
    %v67 = vadd.f32 %v52, %v62
    %v68 = vadd.f32 %v53, %v62
    %v69 = vadd.f32 %v54, %v62
    %v70 = vadd.f32 %v55, %v62
    %v71 = vadd.f32 %v56, %v62
    %v72 = vmax.f32 %v64, 0.0
    %v73 = vmax.f32 %v65, 0.0
    %v74 = vmax.f32 %v66, 0.0
    %v75 = vmax.f32 %v67, 0.0
    %v76 = vmax.f32 %v68, 0.0
    %v77 = vmax.f32 %v69, 0.0
    %v78 = vmax.f32 %v70, 0.0
    %v79 = vmax.f32 %v71, 0.0
    %v80 = vpack.c.bf16 %v73, %v72
    %v81 = vpack.c.bf16 %v75, %v74
    %v82 = vpack.c.bf16 %v77, %v76
    %v83 = vpack.c.bf16 %v79, %v78
    %v84 = vld [vmem:[#allocation4] sm:$0xff]
    %v85 = vld [vmem:[#allocation4 + $0x8] sm:$0xff]
    %v88 = vunpack.c.l.b16 %v84
    %v89 = vunpack.c.h.b16 %v84
    %v90 = vunpack.c.l.b16 %v85
    %v91 = vunpack.c.h.b16 %v85
    %v92 = vpack.c.b16 %v90, %v88
    %v93 = vpack.c.b16 %v91, %v89
    %vm96 = vcmask 130048
    %v98 = vsel %vm96, %v80, 0
    %v101 = vsel %vm96, %v81, 0
    %v104 = vsel %vm96, %v82, 0
    %v107 = vsel %vm96, %v83, 0
    %109 = vmatprep.subr.bf16.mxu0 %v93
    %110 = vmatpush1.bf16.msra.mxu0 %v92
    %111 = vmatprep.subr.bf16.mxu0 0
    %112 = vmatpush1.bf16.msra.mxu0 0
    %113 = vmatprep.subr.bf16.mxu0 0
    %114 = vmatpush1.bf16.msra.mxu0 0
    %115 = vmatprep.subr.bf16.mxu0 0
    %116 = vmatpush1.bf16.msra.mxu0 0
    %117 = vmatprep.subr.bf16.mxu0 0
    %118 = vmatpush1.bf16.msra.mxu0 0
    %119 = vmatprep.subr.bf16.mxu0 0
    %120 = vmatpush1.bf16.msra.mxu0 0
    %121 = vmatprep.subr.bf16.mxu0 0
    %122 = vmatpush1.bf16.msra.mxu0 0
    %123 = vmatprep.subr.bf16.mxu0 0
    %124 = vmatpush1.bf16.msra.mxu0 0
    %125 = vmatprep.subr.bf16.mxu0 0
    %126 = vmatpush1.bf16.msra.mxu0 0
    %127 = vmatprep.subr.bf16.mxu0 0
    %128 = vmatpush1.bf16.msra.mxu0 0
    %129 = vmatprep.subr.bf16.mxu0 0
    %130 = vmatpush1.bf16.msra.mxu0 0
    %131 = vmatprep.subr.bf16.mxu0 0
    %132 = vmatpush1.bf16.msra.mxu0 0
    %133 = vmatprep.subr.bf16.mxu0 0
    %134 = vmatpush1.bf16.msra.mxu0 0
    %135 = vmatprep.subr.bf16.mxu0 0
    %136 = vmatpush1.bf16.msra.mxu0 0
    %137 = vmatprep.subr.bf16.mxu0 0
    %138 = vmatpush1.bf16.msra.mxu0 0
    %139 = vmatprep.subr.bf16.mxu0 0
    %140 = vmatpush1.bf16.msra.mxu0 0
    %141 = vmatprep.mubr.bf16.mxu0 0
    %142 = vmatmul.mubr.bf16.gmra.mrb[0].mxu0 %v98
    %v143 = vpop.f32.mrb[0].mxu0
    %v144 = vadd.f32 0.0, %v143
    %v145 = vpop.f32.mrb[0].mxu0
    %v146 = vadd.f32 0.0, %v145
    %v147 = vpop.f32.mrb[0].mxu0
    %v148 = vadd.f32 0.0, %v147
    %v149 = vpop.f32.mrb[0].mxu0
    %v150 = vadd.f32 0.0, %v149
    %151 = vmatprep.mubr.bf16.mxu0 0
    %152 = vmatmul.mubr.bf16.gmra.mrb[0].mxu0 %v101
    %v153 = vpop.f32.mrb[0].mxu0
    %v154 = vadd.f32 0.0, %v153
    %v155 = vpop.f32.mrb[0].mxu0
    %v156 = vadd.f32 0.0, %v155
    %v157 = vpop.f32.mrb[0].mxu0
    %v158 = vadd.f32 0.0, %v157
    %v159 = vpop.f32.mrb[0].mxu0
    %v160 = vadd.f32 0.0, %v159
    %161 = vmatprep.mubr.bf16.mxu0 0
    %162 = vmatmul.mubr.bf16.gmra.mrb[0].mxu0 %v104
    %v163 = vpop.f32.mrb[0].mxu0
    %v164 = vadd.f32 0.0, %v163
    %v165 = vpop.f32.mrb[0].mxu0
    %v166 = vadd.f32 0.0, %v165
    %v167 = vpop.f32.mrb[0].mxu0
    %v168 = vadd.f32 0.0, %v167
    %v169 = vpop.f32.mrb[0].mxu0
    %v170 = vadd.f32 0.0, %v169
    %171 = vmatprep.mubr.bf16.mxu0 0
    %172 = vmatmul.mubr.bf16.gmra.mrb[0].mxu0 %v107
    %v173 = vpop.f32.mrb[0].mxu0
    %v174 = vadd.f32 0.0, %v173
    %v175 = vpop.f32.mrb[0].mxu0
    %v176 = vadd.f32 0.0, %v175
    %v177 = vpop.f32.mrb[0].mxu0
    %v178 = vadd.f32 0.0, %v177
    %v179 = vpop.f32.mrb[0].mxu0
    %v180 = vadd.f32 0.0, %v179
    %181 = vdwg.mxu0
    %182 = vst [vmem:[%s3] sm:$0xff] %v144
    %183 = vst [vmem:[%s3 + $0x8] sm:$0xff] %v146
    %184 = vst [vmem:[%s3 + $0x10] sm:$0xff] %v148
    %185 = vst [vmem:[%s3 + $0x18] sm:$0xff] %v150
    %186 = vst [vmem:[%s3 + $0x20] sm:$0xff] %v154
    %187 = vst [vmem:[%s3 + $0x28] sm:$0xff] %v156
    %188 = vst [vmem:[%s3 + $0x30] sm:$0xff] %v158
    %189 = vst [vmem:[%s3 + $0x38] sm:$0xff] %v160
    %190 = vst [vmem:[%s3 + $0x40] sm:$0xff] %v164
    %191 = vst [vmem:[%s3 + $0x48] sm:$0xff] %v166
    %192 = vst [vmem:[%s3 + $0x50] sm:$0xff] %v168
    %193 = vst [vmem:[%s3 + $0x58] sm:$0xff] %v170
    %194 = vst [vmem:[%s3 + $0x60] sm:$0xff] %v174
    %195 = vst [vmem:[%s3 + $0x68] sm:$0xff] %v176
    %196 = vst [vmem:[%s3 + $0x70] sm:$0xff] %v178
    %197 = vst [vmem:[%s3 + $0x78] sm:$0xff] %v180
    // Predicated region
    $region22: #{pixel_decoder_forward.5} parent=1 // pred_check
      _
    $region23: #{pixel_decoder_forward.5} parent=1 // pred_check_branch
      %199 = sbr.rel (0) target = $region25
    $region24: #{pixel_decoder_forward.5} parent=1 // pred_region
      _
    $region25: #{pixel_decoder_forward.5} parent=1 // pred_fallthru
      _
    // Predicated region
    $region26: #{pixel_decoder_forward.5} parent=1 // pred_check
      _
    $region27: #{pixel_decoder_forward.5} parent=1 // pred_check_branch
      %201 = sbr.rel (0) target = $region29
    $region28: #{pixel_decoder_forward.5} parent=1 // pred_region
      _
    $region29: #{pixel_decoder_forward.5} parent=1 // pred_fallthru
      _
    %202 = vsyncpa [#allocation3], 1
    %203 = vsyncpa [#allocation5], 1

// kernel: pixel_decoder_forward.4
$region0: #{pixel_decoder_forward.4}
  #allocation0 [shape = 'u32[]', space=smem, size = 0x4, offset = 0x4, fixed_abs, tag = 'smem constant byte address 0x4 - core index']
  #allocation1 [shape = 'u32[144,128]{1,0:T(1,128)}', space=vmem, size = 0x12000, scoped, tag = 'internal scratch']
  %s0 = inlined_call_operand.vmem [shape: bf16[8,32], index: 0, kind: input, shape index: {}]
  %s1 = inlined_call_operand.hbm [shape: bf16[32,128], index: 1, kind: input, shape index: {}]
  %s2 = inlined_call_operand.hbm [shape: f32[1,128], index: 2, kind: input, shape index: {}]
  %s3 = inlined_call_operand.hbm [shape: bf16[128,512], index: 3, kind: input, shape index: {}]
  %s4 = inlined_call_operand.hbm [shape: f32[1,512], index: 4, kind: input, shape index: {}]
  %s5 = inlined_call_operand.vmem [shape: f32[8,512], index: 5, kind: output, shape index: {}]
  %s6 = sld [smem:[#allocation0]]
  $region46: #{pixel_decoder_forward.4} parent=0
    _
  %s8 = ssub.s32 1, %s6
  %s9 = scalar_select 0, %s8, %s6
  $region1: #{pixel_decoder_forward.4} parent=0
    #allocation2 [shape = 'u8[8192]{0}', space=vmem, size = 0x2000, scoped, tag = 'input window, operand 1, single buffered']
    #allocation3 [shape = 's32[1]{0}', space=sflag, size = 0x4, scoped, tag = 'scoped memory for pixel_decoder_forward.4']
    #allocation4 [shape = 'u8[512]{0}', space=vmem, size = 0x400, scoped, tag = 'input window, operand 2, single buffered']
    #allocation5 [shape = 's32[1]{0}', space=sflag, size = 0x4, scoped, tag = 'scoped memory for pixel_decoder_forward.4']
    #allocation6 [shape = 'u8[131072]{0}', space=vmem, size = 0x20000, scoped, tag = 'input window, operand 3, single buffered']
    #allocation7 [shape = 'u8[2048]{0}', space=vmem, size = 0x800, scoped, tag = 'input window, operand 4, single buffered']
    #allocation8 [shape = 's32[1]{0}', space=sflag, size = 0x4, scoped, tag = 'scoped memory for pixel_decoder_forward.4']
    %10 = vsyncpa [#allocation3], 0
    %11 = vsyncpa [#allocation5], 0
    %12 = vsyncpa [#allocation8], 0
    // Predicated region
    $region2: #{pixel_decoder_forward.4} parent=1 // pred_check
      _
    $region3: #{pixel_decoder_forward.4} parent=1 // pred_check_branch
      %14 = sbr.rel (0) target = $region5
    $region4: #{pixel_decoder_forward.4} parent=1 // pred_region
      _
    $region5: #{pixel_decoder_forward.4} parent=1 // pred_fallthru
      _
    // Predicated region
    $region6: #{pixel_decoder_forward.4} parent=1 // pred_check
      _
    $region7: #{pixel_decoder_forward.4} parent=1 // pred_check_branch
      %16 = sbr.rel (0) target = $region9
    $region8: #{pixel_decoder_forward.4} parent=1 // pred_region
      %s18 = ssub.s32 256, 256
      %19 = vsyncadd [#allocation3], %s18
      %s20 = sshll.u32 [#allocation2], 4
      %s21 = int_to_ptr.vmem [resolvable:$true] %s20
      %26 = dma.hbm_to_vmem [thread:$0]  %s1, 256, %s21, [#allocation3], 64, 64, 4
    $region9: #{pixel_decoder_forward.4} parent=1 // pred_fallthru
      _
    // Predicated region
    $region10: #{pixel_decoder_forward.4} parent=1 // pred_check
      _
    $region11: #{pixel_decoder_forward.4} parent=1 // pred_check_branch
      %28 = sbr.rel (0) target = $region13
    $region12: #{pixel_decoder_forward.4} parent=1 // pred_region
      %s30 = ssub.s32 16, 16
      %31 = vsyncadd [#allocation5], %s30
      %s33 = sshll.u32 [#allocation4], 4
      %s34 = int_to_ptr.vmem [resolvable:$true] %s33
      %36 = dma.hbm_to_vmem [thread:$0]  %s2, 16, %s34, [#allocation5]
    $region13: #{pixel_decoder_forward.4} parent=1 // pred_fallthru
      _
    // Predicated region
    $region14: #{pixel_decoder_forward.4} parent=1 // pred_check
      _
    $region15: #{pixel_decoder_forward.4} parent=1 // pred_check_branch
      %38 = sbr.rel (0) target = $region17
    $region16: #{pixel_decoder_forward.4} parent=1 // pred_region
      %s40 = ssub.s32 4096, 4096
      %41 = vsyncadd [#allocation5], %s40
      %s42 = sshll.u32 [#allocation6], 4
      %s43 = int_to_ptr.vmem [resolvable:$true] %s42
      %48 = dma.hbm_to_vmem [thread:$0]  %s3, 4096, %s43, [#allocation5], 256, 256, 16
    $region17: #{pixel_decoder_forward.4} parent=1 // pred_fallthru
      _
    // Predicated region
    $region18: #{pixel_decoder_forward.4} parent=1 // pred_check
      _
    $region19: #{pixel_decoder_forward.4} parent=1 // pred_check_branch
      %50 = sbr.rel (0) target = $region21
    $region20: #{pixel_decoder_forward.4} parent=1 // pred_region
      %s52 = ssub.s32 64, 64
      %53 = vsyncadd [#allocation8], %s52
      %s55 = sshll.u32 [#allocation7], 4
      %s56 = int_to_ptr.vmem [resolvable:$true] %s55
      %58 = dma.hbm_to_vmem [thread:$0]  %s4, 64, %s56, [#allocation8]
    $region21: #{pixel_decoder_forward.4} parent=1 // pred_fallthru
      _
    // Predicated region
    $region22: #{pixel_decoder_forward.4} parent=1 // pred_check
      _
    $region23: #{pixel_decoder_forward.4} parent=1 // pred_check_branch
      %60 = sbr.rel (0) target = $region25
    $region24: #{pixel_decoder_forward.4} parent=1 // pred_region
      %61 = dma.done [#allocation3], 256
    $region25: #{pixel_decoder_forward.4} parent=1 // pred_fallthru
      _
    // Predicated region
    $region26: #{pixel_decoder_forward.4} parent=1 // pred_check
      _
    $region27: #{pixel_decoder_forward.4} parent=1 // pred_check_branch
      %63 = sbr.rel (0) target = $region29
    $region28: #{pixel_decoder_forward.4} parent=1 // pred_region
      %64 = dma.done [#allocation5], 16
    $region29: #{pixel_decoder_forward.4} parent=1 // pred_fallthru
      _
    // Predicated region
    $region30: #{pixel_decoder_forward.4} parent=1 // pred_check
      _
    $region31: #{pixel_decoder_forward.4} parent=1 // pred_check_branch
      %66 = sbr.rel (0) target = $region33
    $region32: #{pixel_decoder_forward.4} parent=1 // pred_region
      %67 = dma.done [#allocation5], 4096
    $region33: #{pixel_decoder_forward.4} parent=1 // pred_fallthru
      _
    // Predicated region
    $region34: #{pixel_decoder_forward.4} parent=1 // pred_check
      _
    $region35: #{pixel_decoder_forward.4} parent=1 // pred_check_branch
      %69 = sbr.rel (0) target = $region37
    $region36: #{pixel_decoder_forward.4} parent=1 // pred_region
      %70 = dma.done [#allocation8], 64
    $region37: #{pixel_decoder_forward.4} parent=1 // pred_fallthru
      _
    %v72 = vld [vmem:[%s0] sm:$0xf]
    %v73 = vld [vmem:[#allocation2] sm:$0xf]
    %v74 = vld [vmem:[#allocation2 + $0x4] sm:$0xf]
    %v75 = vld [vmem:[#allocation2 + $0x8] sm:$0xf]
    %v76 = vld [vmem:[#allocation2 + $0xc] sm:$0xf]
    %v77 = vld [vmem:[#allocation4] sm:$0x1]
    %v79 = vlaneseq
    %v80 = vshrl.u32 %v79, 7
    %v81 = vsub.s32 0, %v80
    %v82 = vrot.slane %v77, %v81
    %v88 = vunpack.c.l.b16 %v73
    %v89 = vunpack.c.l.b16 %v74
    %v90 = vunpack.c.l.b16 %v75
    %v91 = vunpack.c.l.b16 %v76
    %v92 = vpack.c.b16 %v89, %v88
    %v93 = vpack.c.b16 %v91, %v90
    %vm96 = vcmask 261120
    %v98 = vsel %vm96, %v72, 0
    %100 = vmatprep.subr.bf16.mxu0 0
    %101 = vmatpush1.bf16.msra.mxu0 %v92
    %102 = vmatprep.subr.bf16.mxu0 0
    %103 = vmatpush1.bf16.msra.mxu0 %v93
    %104 = vmatprep.subr.bf16.mxu0 0
    %105 = vmatpush1.bf16.msra.mxu0 0
    %106 = vmatprep.subr.bf16.mxu0 0
    %107 = vmatpush1.bf16.msra.mxu0 0
    %108 = vmatprep.subr.bf16.mxu0 0
    %109 = vmatpush1.bf16.msra.mxu0 0
    %110 = vmatprep.subr.bf16.mxu0 0
    %111 = vmatpush1.bf16.msra.mxu0 0
    %112 = vmatprep.subr.bf16.mxu0 0
    %113 = vmatpush1.bf16.msra.mxu0 0
    %114 = vmatprep.subr.bf16.mxu0 0
    %115 = vmatpush1.bf16.msra.mxu0 0
    %116 = vmatprep.subr.bf16.mxu0 0
    %117 = vmatpush1.bf16.msra.mxu0 0
    %118 = vmatprep.subr.bf16.mxu0 0
    %119 = vmatpush1.bf16.msra.mxu0 0
    %120 = vmatprep.subr.bf16.mxu0 0
    %121 = vmatpush1.bf16.msra.mxu0 0
    %122 = vmatprep.subr.bf16.mxu0 0
    %123 = vmatpush1.bf16.msra.mxu0 0
    %124 = vmatprep.subr.bf16.mxu0 0
    %125 = vmatpush1.bf16.msra.mxu0 0
    %126 = vmatprep.subr.bf16.mxu0 0
    %127 = vmatpush1.bf16.msra.mxu0 0
    %128 = vmatprep.subr.bf16.mxu0 0
    %129 = vmatpush1.bf16.msra.mxu0 0
    %130 = vmatprep.subr.bf16.mxu0 0
    %131 = vmatpush1.bf16.msra.mxu0 0
    %132 = vmatprep.mubr.bf16.mxu0 0
    %133 = vmatmul.mubr.bf16.gmra.mrb[0].mxu0 %v98
    %v134 = vpop.f32.mrb[0].mxu0
    %v135 = vadd.f32 %v82, %v134
    %v136 = vpop.f32.mrb[0].mxu0
    %v137 = vpop.f32.mrb[0].mxu0
    %v138 = vpop.f32.mrb[0].mxu0
    %139 = vdwg.mxu0
    %v140 = vpack.c.bf16 %v135, %v135
    %v141 = vld [vmem:[#allocation6] sm:$0xff]
    %v142 = vld [vmem:[#allocation6 + $0x8] sm:$0xff]
    %v143 = vld [vmem:[#allocation6 + $0x10] sm:$0xff]
    %v144 = vld [vmem:[#allocation6 + $0x18] sm:$0xff]
    %v145 = vld [vmem:[#allocation6 + $0x20] sm:$0xff]
    %v146 = vld [vmem:[#allocation6 + $0x28] sm:$0xff]
    %v147 = vld [vmem:[#allocation6 + $0x30] sm:$0xff]
    %v148 = vld [vmem:[#allocation6 + $0x38] sm:$0xff]
    %v149 = vld [vmem:[#allocation6 + $0x40] sm:$0xff]
    %v150 = vld [vmem:[#allocation6 + $0x48] sm:$0xff]
    %v151 = vld [vmem:[#allocation6 + $0x50] sm:$0xff]
    %v152 = vld [vmem:[#allocation6 + $0x58] sm:$0xff]
    %v153 = vld [vmem:[#allocation6 + $0x60] sm:$0xff]
    %v154 = vld [vmem:[#allocation6 + $0x68] sm:$0xff]
    %v155 = vld [vmem:[#allocation6 + $0x70] sm:$0xff]
    %v156 = vld [vmem:[#allocation6 + $0x78] sm:$0xff]
    %v157 = vld [vmem:[#allocation6 + $0x80] sm:$0xff]
    %v158 = vld [vmem:[#allocation6 + $0x88] sm:$0xff]
    %v159 = vld [vmem:[#allocation6 + $0x90] sm:$0xff]
    %v160 = vld [vmem:[#allocation6 + $0x98] sm:$0xff]
    %v161 = vld [vmem:[#allocation6 + $0xa0] sm:$0xff]
    %v162 = vld [vmem:[#allocation6 + $0xa8] sm:$0xff]
    %v163 = vld [vmem:[#allocation6 + $0xb0] sm:$0xff]
    %v164 = vld [vmem:[#allocation6 + $0xb8] sm:$0xff]
    %v165 = vld [vmem:[#allocation6 + $0xc0] sm:$0xff]
    %v166 = vld [vmem:[#allocation6 + $0xc8] sm:$0xff]
    %v167 = vld [vmem:[#allocation6 + $0xd0] sm:$0xff]
    %v168 = vld [vmem:[#allocation6 + $0xd8] sm:$0xff]
    %v169 = vld [vmem:[#allocation6 + $0xe0] sm:$0xff]
    %v170 = vld [vmem:[#allocation6 + $0xe8] sm:$0xff]
    %v171 = vld [vmem:[#allocation6 + $0xf0] sm:$0xff]
    %v172 = vld [vmem:[#allocation6 + $0xf8] sm:$0xff]
    %v173 = vld [vmem:[#allocation7] sm:$0xf]
    %v175 = vlaneseq
    %v176 = vshrl.u32 %v175, 7
    %v177 = vsub.s32 0, %v176
    %v178 = vrot.slane %v173, %v177
    %v179 = vlaneseq
    %v180 = vshrl.u32 %v179, 7
    %v181 = vsub.s32 1, %v180
    %v182 = vrot.slane %v173, %v181
    %v183 = vlaneseq
    %v184 = vshrl.u32 %v183, 7
    %v185 = vsub.s32 2, %v184
    %v186 = vrot.slane %v173, %v185
    %v187 = vlaneseq
    %v188 = vshrl.u32 %v187, 7
    %v189 = vsub.s32 3, %v188
    %v190 = vrot.slane %v173, %v189
    %v227 = vunpack.c.l.b16 %v141
    %v228 = vunpack.c.h.b16 %v141
    %v229 = vunpack.c.l.b16 %v142
    %v230 = vunpack.c.h.b16 %v142
    %v231 = vunpack.c.l.b16 %v143
    %v232 = vunpack.c.h.b16 %v143
    %v233 = vunpack.c.l.b16 %v144
    %v234 = vunpack.c.h.b16 %v144
    %v235 = vunpack.c.l.b16 %v145
    %v236 = vunpack.c.h.b16 %v145
    %v237 = vunpack.c.l.b16 %v146
    %v238 = vunpack.c.h.b16 %v146
    %v239 = vunpack.c.l.b16 %v147
    %v240 = vunpack.c.h.b16 %v147
    %v241 = vunpack.c.l.b16 %v148
    %v242 = vunpack.c.h.b16 %v148
    %v243 = vunpack.c.l.b16 %v149
    %v244 = vunpack.c.h.b16 %v149
    %v245 = vunpack.c.l.b16 %v150
    %v246 = vunpack.c.h.b16 %v150
    %v247 = vunpack.c.l.b16 %v151
    %v248 = vunpack.c.h.b16 %v151
    %v249 = vunpack.c.l.b16 %v152
    %v250 = vunpack.c.h.b16 %v152
    %v251 = vunpack.c.l.b16 %v153
    %v252 = vunpack.c.h.b16 %v153
    %v253 = vunpack.c.l.b16 %v154
    %v254 = vunpack.c.h.b16 %v154
    %v255 = vunpack.c.l.b16 %v155
    %v256 = vunpack.c.h.b16 %v155
    %v257 = vunpack.c.l.b16 %v156
    %v258 = vunpack.c.h.b16 %v156
    %v259 = vunpack.c.l.b16 %v157
    %v260 = vunpack.c.h.b16 %v157
    %v261 = vunpack.c.l.b16 %v158
    %v262 = vunpack.c.h.b16 %v158
    %v263 = vunpack.c.l.b16 %v159
    %v264 = vunpack.c.h.b16 %v159
    %v265 = vunpack.c.l.b16 %v160
    %v266 = vunpack.c.h.b16 %v160
    %v267 = vunpack.c.l.b16 %v161
    %v268 = vunpack.c.h.b16 %v161
    %v269 = vunpack.c.l.b16 %v162
    %v270 = vunpack.c.h.b16 %v162
    %v271 = vunpack.c.l.b16 %v163
    %v272 = vunpack.c.h.b16 %v163
    %v273 = vunpack.c.l.b16 %v164
    %v274 = vunpack.c.h.b16 %v164
    %v275 = vunpack.c.l.b16 %v165
    %v276 = vunpack.c.h.b16 %v165
    %v277 = vunpack.c.l.b16 %v166
    %v278 = vunpack.c.h.b16 %v166
    %v279 = vunpack.c.l.b16 %v167
    %v280 = vunpack.c.h.b16 %v167
    %v281 = vunpack.c.l.b16 %v168
    %v282 = vunpack.c.h.b16 %v168
    %v283 = vunpack.c.l.b16 %v169
    %v284 = vunpack.c.h.b16 %v169
    %v285 = vunpack.c.l.b16 %v170
    %v286 = vunpack.c.h.b16 %v170
    %v287 = vunpack.c.l.b16 %v171
    %v288 = vunpack.c.h.b16 %v171
    %v289 = vunpack.c.l.b16 %v172
    %v290 = vunpack.c.h.b16 %v172
    %v291 = vpack.c.b16 %v231, %v227
    %v292 = vpack.c.b16 %v232, %v228
    %v293 = vpack.c.b16 %v233, %v229
    %v294 = vpack.c.b16 %v234, %v230
    %v295 = vpack.c.b16 %v239, %v235
    %v296 = vpack.c.b16 %v240, %v236
    %v297 = vpack.c.b16 %v241, %v237
    %v298 = vpack.c.b16 %v242, %v238
    %v299 = vpack.c.b16 %v247, %v243
    %v300 = vpack.c.b16 %v248, %v244
    %v301 = vpack.c.b16 %v249, %v245
    %v302 = vpack.c.b16 %v250, %v246
    %v303 = vpack.c.b16 %v255, %v251
    %v304 = vpack.c.b16 %v256, %v252
    %v305 = vpack.c.b16 %v257, %v253
    %v306 = vpack.c.b16 %v258, %v254
    %v307 = vpack.c.b16 %v263, %v259
    %v308 = vpack.c.b16 %v264, %v260
    %v309 = vpack.c.b16 %v265, %v261
    %v310 = vpack.c.b16 %v266, %v262
    %v311 = vpack.c.b16 %v271, %v267
    %v312 = vpack.c.b16 %v272, %v268
    %v313 = vpack.c.b16 %v273, %v269
    %v314 = vpack.c.b16 %v274, %v270
    %v315 = vpack.c.b16 %v279, %v275
    %v316 = vpack.c.b16 %v280, %v276
    %v317 = vpack.c.b16 %v281, %v277
    %v318 = vpack.c.b16 %v282, %v278
    %v319 = vpack.c.b16 %v287, %v283
    %v320 = vpack.c.b16 %v288, %v284
    %v321 = vpack.c.b16 %v289, %v285
    %v322 = vpack.c.b16 %v290, %v286
    %355 = vmatprep.subr.bf16.mxu0 %v292
    %356 = vmatpush1.bf16.msra.mxu0 %v291
    %357 = vmatprep.subr.bf16.mxu0 %v296
    %358 = vmatpush1.bf16.msra.mxu0 %v295
    %359 = vmatprep.subr.bf16.mxu0 %v300
    %360 = vmatpush1.bf16.msra.mxu0 %v299
    %361 = vmatprep.subr.bf16.mxu0 %v304
    %362 = vmatpush1.bf16.msra.mxu0 %v303
    %363 = vmatprep.subr.bf16.mxu0 %v308
    %364 = vmatpush1.bf16.msra.mxu0 %v307
    %365 = vmatprep.subr.bf16.mxu0 %v312
    %366 = vmatpush1.bf16.msra.mxu0 %v311
    %367 = vmatprep.subr.bf16.mxu0 %v316
    %368 = vmatpush1.bf16.msra.mxu0 %v315
    %369 = vmatprep.subr.bf16.mxu0 %v320
    %370 = vmatpush1.bf16.msra.mxu0 %v319
    %371 = vmatprep.subr.bf16.mxu0 0
    %372 = vmatpush1.bf16.msra.mxu0 0
    %373 = vmatprep.subr.bf16.mxu0 0
    %374 = vmatpush1.bf16.msra.mxu0 0
    %375 = vmatprep.subr.bf16.mxu0 0
    %376 = vmatpush1.bf16.msra.mxu0 0
    %377 = vmatprep.subr.bf16.mxu0 0
    %378 = vmatpush1.bf16.msra.mxu0 0
    %379 = vmatprep.subr.bf16.mxu0 0
    %380 = vmatpush1.bf16.msra.mxu0 0
    %381 = vmatprep.subr.bf16.mxu0 0
    %382 = vmatpush1.bf16.msra.mxu0 0
    %383 = vmatprep.subr.bf16.mxu0 0
    %384 = vmatpush1.bf16.msra.mxu0 0
    %385 = vmatprep.subr.bf16.mxu0 0
    %386 = vmatpush1.bf16.msra.mxu0 0
    %387 = vmatprep.mubr.bf16.mxu0 0
    %388 = vmatmul.mubr.bf16.gmra.mrb[0].mxu0 %v140
    %v389 = vpop.f32.mrb[0].mxu0
    %v390 = vadd.f32 %v178, %v389
    %v391 = vpop.f32.mrb[0].mxu0
    %v392 = vadd.f32 %v182, %v391
    %v393 = vpop.f32.mrb[0].mxu0
    %v394 = vpop.f32.mrb[0].mxu0
    %395 = vdwg.mxu0
    %396 = vmatprep.subr.bf16.mxu0 %v294
    %397 = vmatpush1.bf16.msra.mxu0 %v293
    %398 = vmatprep.subr.bf16.mxu0 %v298
    %399 = vmatpush1.bf16.msra.mxu0 %v297
    %400 = vmatprep.subr.bf16.mxu0 %v302
    %401 = vmatpush1.bf16.msra.mxu0 %v301
    %402 = vmatprep.subr.bf16.mxu0 %v306
    %403 = vmatpush1.bf16.msra.mxu0 %v305
    %404 = vmatprep.subr.bf16.mxu0 %v310
    %405 = vmatpush1.bf16.msra.mxu0 %v309
    %406 = vmatprep.subr.bf16.mxu0 %v314
    %407 = vmatpush1.bf16.msra.mxu0 %v313
    %408 = vmatprep.subr.bf16.mxu0 %v318
    %409 = vmatpush1.bf16.msra.mxu0 %v317
    %410 = vmatprep.subr.bf16.mxu0 %v322
    %411 = vmatpush1.bf16.msra.mxu0 %v321
    %412 = vmatprep.subr.bf16.mxu0 0
    %413 = vmatpush1.bf16.msra.mxu0 0
    %414 = vmatprep.subr.bf16.mxu0 0
    %415 = vmatpush1.bf16.msra.mxu0 0
    %416 = vmatprep.subr.bf16.mxu0 0
    %417 = vmatpush1.bf16.msra.mxu0 0
    %418 = vmatprep.subr.bf16.mxu0 0
    %419 = vmatpush1.bf16.msra.mxu0 0
    %420 = vmatprep.subr.bf16.mxu0 0
    %421 = vmatpush1.bf16.msra.mxu0 0
    %422 = vmatprep.subr.bf16.mxu0 0
    %423 = vmatpush1.bf16.msra.mxu0 0
    %424 = vmatprep.subr.bf16.mxu0 0
    %425 = vmatpush1.bf16.msra.mxu0 0
    %426 = vmatprep.subr.bf16.mxu0 0
    %427 = vmatpush1.bf16.msra.mxu0 0
    %428 = vmatprep.mubr.bf16.mxu0 0
    %429 = vmatmul.mubr.bf16.gmra.mrb[0].mxu0 %v140
    %v430 = vpop.f32.mrb[0].mxu0
    %v431 = vadd.f32 %v186, %v430
    %v432 = vpop.f32.mrb[0].mxu0
    %v433 = vadd.f32 %v190, %v432
    %v434 = vpop.f32.mrb[0].mxu0
    %v435 = vpop.f32.mrb[0].mxu0
    %436 = vdwg.mxu0
    %v437 = vmax.f32 %v390, 0.0
    %v438 = vmax.f32 %v392, 0.0
    %v439 = vmax.f32 %v431, 0.0
    %v440 = vmax.f32 %v433, 0.0
    %441 = vst [vmem:[%s5] sm:$0xff] %v437
    %442 = vst [vmem:[%s5 + $0x8] sm:$0xff] %v438
    %443 = vst [vmem:[%s5 + $0x10] sm:$0xff] %v439
    %444 = vst [vmem:[%s5 + $0x18] sm:$0xff] %v440
    // Predicated region
    $region38: #{pixel_decoder_forward.4} parent=1 // pred_check
      _
    $region39: #{pixel_decoder_forward.4} parent=1 // pred_check_branch
      %446 = sbr.rel (0) target = $region41
    $region40: #{pixel_decoder_forward.4} parent=1 // pred_region
      _
    $region41: #{pixel_decoder_forward.4} parent=1 // pred_fallthru
      _
    // Predicated region
    $region42: #{pixel_decoder_forward.4} parent=1 // pred_check
      _
    $region43: #{pixel_decoder_forward.4} parent=1 // pred_check_branch
      %448 = sbr.rel (0) target = $region45
    $region44: #{pixel_decoder_forward.4} parent=1 // pred_region
      _
    $region45: #{pixel_decoder_forward.4} parent=1 // pred_fallthru
      _
    %449 = vsyncpa [#allocation3], 1
    %450 = vsyncpa [#allocation5], 1
    %451 = vsyncpa [#allocation8], 1

// kernel: pixel_decoder_forward.6
$region0: #{pixel_decoder_forward.6}
  #allocation0 [shape = 'u32[]', space=smem, size = 0x4, offset = 0x4, fixed_abs, tag = 'smem constant byte address 0x4 - core index']
  #allocation1 [shape = 'u32[144,128]{1,0:T(1,128)}', space=vmem, size = 0x12000, scoped, tag = 'internal scratch']
  %s0 = inlined_call_operand.vmem [shape: bf16[352,8], index: 0, kind: input, shape index: {}]
  %s1 = inlined_call_operand.vmem [shape: f32[1,8], index: 1, kind: input, shape index: {}]
  %s2 = inlined_call_operand.vmem [shape: bf16[8,256], index: 2, kind: input, shape index: {}]
  %s3 = inlined_call_operand.vmem [shape: f32[352,256], index: 3, kind: output, shape index: {}]
  %s4 = sld [smem:[#allocation0]]
  $region22: #{pixel_decoder_forward.6} parent=0
    _
  %s6 = ssub.s32 1, %s4
  %s7 = scalar_select 0, %s6, %s4
  // Predicated region
  $region2: #{pixel_decoder_forward.6} parent=0 // pred_check
    _
  $region3: #{pixel_decoder_forward.6} parent=0 // pred_check_branch
    %9 = sbr.rel (0) target = $region5
  $region4: #{pixel_decoder_forward.6} parent=0 // pred_region
    _
  $region5: #{pixel_decoder_forward.6} parent=0 // pred_fallthru
    _
  // Predicated region
  $region6: #{pixel_decoder_forward.6} parent=0 // pred_check
    _
  $region7: #{pixel_decoder_forward.6} parent=0 // pred_check_branch
    %11 = sbr.rel (0) target = $region9
  $region8: #{pixel_decoder_forward.6} parent=0 // pred_region
    _
  $region9: #{pixel_decoder_forward.6} parent=0 // pred_fallthru
    _
  // Predicated region
  $region10: #{pixel_decoder_forward.6} parent=0 // pred_check
    _
  $region11: #{pixel_decoder_forward.6} parent=0 // pred_check_branch
    %13 = sbr.rel (0) target = $region13
  $region12: #{pixel_decoder_forward.6} parent=0 // pred_region
    _
  $region13: #{pixel_decoder_forward.6} parent=0 // pred_fallthru
    _
  %v15 = vld [vmem:[%s0] sm:$0xf]
  %v16 = vld [vmem:[%s0 + $0x4] sm:$0xf]
  %v17 = vld [vmem:[%s0 + $0x8] sm:$0xf]
  %v18 = vld [vmem:[%s0 + $0xc] sm:$0xf]
  %v19 = vld [vmem:[%s0 + $0x10] sm:$0xf]
  %v20 = vld [vmem:[%s0 + $0x14] sm:$0xf]
  %v21 = vld [vmem:[%s0 + $0x18] sm:$0xf]
  %v22 = vld [vmem:[%s0 + $0x1c] sm:$0xf]
  %v23 = vld [vmem:[%s0 + $0x20] sm:$0xf]
  %v24 = vld [vmem:[%s0 + $0x24] sm:$0xf]
  %v25 = vld [vmem:[%s0 + $0x28] sm:$0xf]
  %v26 = vld [vmem:[%s0 + $0x2c] sm:$0xf]
  %v27 = vld [vmem:[%s0 + $0x30] sm:$0xf]
  %v28 = vld [vmem:[%s0 + $0x34] sm:$0xf]
  %v29 = vld [vmem:[%s0 + $0x38] sm:$0xf]
  %v30 = vld [vmem:[%s0 + $0x3c] sm:$0xf]
  %v31 = vld [vmem:[%s0 + $0x40] sm:$0xf]
  %v32 = vld [vmem:[%s0 + $0x44] sm:$0xf]
  %v33 = vld [vmem:[%s0 + $0x48] sm:$0xf]
  %v34 = vld [vmem:[%s0 + $0x4c] sm:$0xf]
  %v35 = vld [vmem:[%s0 + $0x50] sm:$0xf]
  %v36 = vld [vmem:[%s0 + $0x54] sm:$0xf]
  %v37 = vld [vmem:[%s0 + $0x58] sm:$0xf]
  %v38 = vld [vmem:[%s0 + $0x5c] sm:$0xf]
  %v39 = vld [vmem:[%s0 + $0x60] sm:$0xf]
  %v40 = vld [vmem:[%s0 + $0x64] sm:$0xf]
  %v41 = vld [vmem:[%s0 + $0x68] sm:$0xf]
  %v42 = vld [vmem:[%s0 + $0x6c] sm:$0xf]
  %v43 = vld [vmem:[%s0 + $0x70] sm:$0xf]
  %v44 = vld [vmem:[%s0 + $0x74] sm:$0xf]
  %v45 = vld [vmem:[%s0 + $0x78] sm:$0xf]
  %v46 = vld [vmem:[%s0 + $0x7c] sm:$0xf]
  %v47 = vld [vmem:[%s0 + $0x80] sm:$0xf]
  %v48 = vld [vmem:[%s0 + $0x84] sm:$0xf]
  %v49 = vld [vmem:[%s0 + $0x88] sm:$0xf]
  %v50 = vld [vmem:[%s0 + $0x8c] sm:$0xf]
  %v51 = vld [vmem:[%s0 + $0x90] sm:$0xf]
  %v52 = vld [vmem:[%s0 + $0x94] sm:$0xf]
  %v53 = vld [vmem:[%s0 + $0x98] sm:$0xf]
  %v54 = vld [vmem:[%s0 + $0x9c] sm:$0xf]
  %v55 = vld [vmem:[%s0 + $0xa0] sm:$0xf]
  %v56 = vld [vmem:[%s0 + $0xa4] sm:$0xf]
  %v57 = vld [vmem:[%s0 + $0xa8] sm:$0xf]
  %v58 = vld [vmem:[%s0 + $0xac] sm:$0xf]
  %v59 = vunpack.c.l.bf16 %v15
  %v60 = vunpack.c.l.bf16 %v16
  %v61 = vunpack.c.l.bf16 %v17
  %v62 = vunpack.c.l.bf16 %v18
  %v63 = vunpack.c.l.bf16 %v19
  %v64 = vunpack.c.l.bf16 %v20
  %v65 = vunpack.c.l.bf16 %v21
  %v66 = vunpack.c.l.bf16 %v22
  %v67 = vunpack.c.l.bf16 %v23
  %v68 = vunpack.c.l.bf16 %v24
  %v69 = vunpack.c.l.bf16 %v25
  %v70 = vunpack.c.l.bf16 %v26
  %v71 = vunpack.c.l.bf16 %v27
  %v72 = vunpack.c.l.bf16 %v28
  %v73 = vunpack.c.l.bf16 %v29
  %v74 = vunpack.c.l.bf16 %v30
  %v75 = vunpack.c.l.bf16 %v31
  %v76 = vunpack.c.l.bf16 %v32
  %v77 = vunpack.c.l.bf16 %v33
  %v78 = vunpack.c.l.bf16 %v34
  %v79 = vunpack.c.l.bf16 %v35
  %v80 = vunpack.c.l.bf16 %v36
  %v81 = vunpack.c.l.bf16 %v37
  %v82 = vunpack.c.l.bf16 %v38
  %v83 = vunpack.c.l.bf16 %v39
  %v84 = vunpack.c.l.bf16 %v40
  %v85 = vunpack.c.l.bf16 %v41
  %v86 = vunpack.c.l.bf16 %v42
  %v87 = vunpack.c.l.bf16 %v43
  %v88 = vunpack.c.l.bf16 %v44
  %v89 = vunpack.c.l.bf16 %v45
  %v90 = vunpack.c.l.bf16 %v46
  %v91 = vunpack.c.l.bf16 %v47
  %v92 = vunpack.c.l.bf16 %v48
  %v93 = vunpack.c.l.bf16 %v49
  %v94 = vunpack.c.l.bf16 %v50
  %v95 = vunpack.c.l.bf16 %v51
  %v96 = vunpack.c.l.bf16 %v52
  %v97 = vunpack.c.l.bf16 %v53
  %v98 = vunpack.c.l.bf16 %v54
  %v99 = vunpack.c.l.bf16 %v55
  %v100 = vunpack.c.l.bf16 %v56
  %v101 = vunpack.c.l.bf16 %v57
  %v102 = vunpack.c.l.bf16 %v58
  %v103 = vld [vmem:[%s1] sm:$0x1]
  %v105 = vlaneseq
  %v106 = vshrl.u32 %v105, 7
  %v107 = vsub.s32 0, %v106
  %v108 = vrot.slane %v103, %v107
  %v110 = vadd.f32 %v59, %v108
  %v111 = vadd.f32 %v60, %v108
  %v112 = vadd.f32 %v61, %v108
  %v113 = vadd.f32 %v62, %v108
  %v114 = vadd.f32 %v63, %v108
  %v115 = vadd.f32 %v64, %v108
  %v116 = vadd.f32 %v65, %v108
  %v117 = vadd.f32 %v66, %v108
  %v118 = vadd.f32 %v67, %v108
  %v119 = vadd.f32 %v68, %v108
  %v120 = vadd.f32 %v69, %v108
  %v121 = vadd.f32 %v70, %v108
  %v122 = vadd.f32 %v71, %v108
  %v123 = vadd.f32 %v72, %v108
  %v124 = vadd.f32 %v73, %v108
  %v125 = vadd.f32 %v74, %v108
  %v126 = vadd.f32 %v75, %v108
  %v127 = vadd.f32 %v76, %v108
  %v128 = vadd.f32 %v77, %v108
  %v129 = vadd.f32 %v78, %v108
  %v130 = vadd.f32 %v79, %v108
  %v131 = vadd.f32 %v80, %v108
  %v132 = vadd.f32 %v81, %v108
  %v133 = vadd.f32 %v82, %v108
  %v134 = vadd.f32 %v83, %v108
  %v135 = vadd.f32 %v84, %v108
  %v136 = vadd.f32 %v85, %v108
  %v137 = vadd.f32 %v86, %v108
  %v138 = vadd.f32 %v87, %v108
  %v139 = vadd.f32 %v88, %v108
  %v140 = vadd.f32 %v89, %v108
  %v141 = vadd.f32 %v90, %v108
  %v142 = vadd.f32 %v91, %v108
  %v143 = vadd.f32 %v92, %v108
  %v144 = vadd.f32 %v93, %v108
  %v145 = vadd.f32 %v94, %v108
  %v146 = vadd.f32 %v95, %v108
  %v147 = vadd.f32 %v96, %v108
  %v148 = vadd.f32 %v97, %v108
  %v149 = vadd.f32 %v98, %v108
  %v150 = vadd.f32 %v99, %v108
  %v151 = vadd.f32 %v100, %v108
  %v152 = vadd.f32 %v101, %v108
  %v153 = vadd.f32 %v102, %v108
  %v154 = vmax.f32 %v110, 0.0
  %v155 = vmax.f32 %v111, 0.0
  %v156 = vmax.f32 %v112, 0.0
  %v157 = vmax.f32 %v113, 0.0
  %v158 = vmax.f32 %v114, 0.0
  %v159 = vmax.f32 %v115, 0.0
  %v160 = vmax.f32 %v116, 0.0
  %v161 = vmax.f32 %v117, 0.0
  %v162 = vmax.f32 %v118, 0.0
  %v163 = vmax.f32 %v119, 0.0
  %v164 = vmax.f32 %v120, 0.0
  %v165 = vmax.f32 %v121, 0.0
  %v166 = vmax.f32 %v122, 0.0
  %v167 = vmax.f32 %v123, 0.0
  %v168 = vmax.f32 %v124, 0.0
  %v169 = vmax.f32 %v125, 0.0
  %v170 = vmax.f32 %v126, 0.0
  %v171 = vmax.f32 %v127, 0.0
  %v172 = vmax.f32 %v128, 0.0
  %v173 = vmax.f32 %v129, 0.0
  %v174 = vmax.f32 %v130, 0.0
  %v175 = vmax.f32 %v131, 0.0
  %v176 = vmax.f32 %v132, 0.0
  %v177 = vmax.f32 %v133, 0.0
  %v178 = vmax.f32 %v134, 0.0
  %v179 = vmax.f32 %v135, 0.0
  %v180 = vmax.f32 %v136, 0.0
  %v181 = vmax.f32 %v137, 0.0
  %v182 = vmax.f32 %v138, 0.0
  %v183 = vmax.f32 %v139, 0.0
  %v184 = vmax.f32 %v140, 0.0
  %v185 = vmax.f32 %v141, 0.0
  %v186 = vmax.f32 %v142, 0.0
  %v187 = vmax.f32 %v143, 0.0
  %v188 = vmax.f32 %v144, 0.0
  %v189 = vmax.f32 %v145, 0.0
  %v190 = vmax.f32 %v146, 0.0
  %v191 = vmax.f32 %v147, 0.0
  %v192 = vmax.f32 %v148, 0.0
  %v193 = vmax.f32 %v149, 0.0
  %v194 = vmax.f32 %v150, 0.0
  %v195 = vmax.f32 %v151, 0.0
  %v196 = vmax.f32 %v152, 0.0
  %v197 = vmax.f32 %v153, 0.0
  %v198 = vpack.c.bf16 %v155, %v154
  %v199 = vpack.c.bf16 %v157, %v156
  %v200 = vpack.c.bf16 %v159, %v158
  %v201 = vpack.c.bf16 %v161, %v160
  %v202 = vpack.c.bf16 %v163, %v162
  %v203 = vpack.c.bf16 %v165, %v164
  %v204 = vpack.c.bf16 %v167, %v166
  %v205 = vpack.c.bf16 %v169, %v168
  %v206 = vpack.c.bf16 %v171, %v170
  %v207 = vpack.c.bf16 %v173, %v172
  %v208 = vpack.c.bf16 %v175, %v174
  %v209 = vpack.c.bf16 %v177, %v176
  %v210 = vpack.c.bf16 %v179, %v178
  %v211 = vpack.c.bf16 %v181, %v180
  %v212 = vpack.c.bf16 %v183, %v182
  %v213 = vpack.c.bf16 %v185, %v184
  %v214 = vpack.c.bf16 %v187, %v186
  %v215 = vpack.c.bf16 %v189, %v188
  %v216 = vpack.c.bf16 %v191, %v190
  %v217 = vpack.c.bf16 %v193, %v192
  %v218 = vpack.c.bf16 %v195, %v194
  %v219 = vpack.c.bf16 %v197, %v196
  %v220 = vld [vmem:[%s2] sm:$0xff]
  %v222 = vunpack.c.l.b16 %v220
  %v223 = vunpack.c.h.b16 %v220
  %v224 = vpack.c.b16 %v222, %v222
  %v225 = vpack.c.b16 %v223, %v223
  %vm226 = vcmask 64512
  %v228 = vsel %vm226, %v198, 0
  %v231 = vsel %vm226, %v199, 0
  %v234 = vsel %vm226, %v200, 0
  %v237 = vsel %vm226, %v201, 0
  %v240 = vsel %vm226, %v202, 0
  %v243 = vsel %vm226, %v203, 0
  %v246 = vsel %vm226, %v204, 0
  %v249 = vsel %vm226, %v205, 0
  %v252 = vsel %vm226, %v206, 0
  %v255 = vsel %vm226, %v207, 0
  %v258 = vsel %vm226, %v208, 0
  %v261 = vsel %vm226, %v209, 0
  %v264 = vsel %vm226, %v210, 0
  %v267 = vsel %vm226, %v211, 0
  %v270 = vsel %vm226, %v212, 0
  %v273 = vsel %vm226, %v213, 0
  %v276 = vsel %vm226, %v214, 0
  %v279 = vsel %vm226, %v215, 0
  %v282 = vsel %vm226, %v216, 0
  %v285 = vsel %vm226, %v217, 0
  %v288 = vsel %vm226, %v218, 0
  %v291 = vsel %vm226, %v219, 0
  %vm293 = vcmask 1043456
  %v295 = vsel %vm293, %v224, 0
  %v298 = vsel %vm293, %v225, 0
  %300 = vmatprep.subr.bf16.mxu0 %v298
  %301 = vmatpush1.bf16.msra.mxu0 %v295
  %302 = vmatprep.subr.bf16.mxu0 0
  %303 = vmatpush1.bf16.msra.mxu0 0
  %304 = vmatprep.subr.bf16.mxu0 0
  %305 = vmatpush1.bf16.msra.mxu0 0
  %306 = vmatprep.subr.bf16.mxu0 0
  %307 = vmatpush1.bf16.msra.mxu0 0
  %308 = vmatprep.subr.bf16.mxu0 0
  %309 = vmatpush1.bf16.msra.mxu0 0
  %310 = vmatprep.subr.bf16.mxu0 0
  %311 = vmatpush1.bf16.msra.mxu0 0
  %312 = vmatprep.subr.bf16.mxu0 0
  %313 = vmatpush1.bf16.msra.mxu0 0
  %314 = vmatprep.subr.bf16.mxu0 0
  %315 = vmatpush1.bf16.msra.mxu0 0
  %316 = vmatprep.subr.bf16.mxu0 0
  %317 = vmatpush1.bf16.msra.mxu0 0
  %318 = vmatprep.subr.bf16.mxu0 0
  %319 = vmatpush1.bf16.msra.mxu0 0
  %320 = vmatprep.subr.bf16.mxu0 0
  %321 = vmatpush1.bf16.msra.mxu0 0
  %322 = vmatprep.subr.bf16.mxu0 0
  %323 = vmatpush1.bf16.msra.mxu0 0
  %324 = vmatprep.subr.bf16.mxu0 0
  %325 = vmatpush1.bf16.msra.mxu0 0
  %326 = vmatprep.subr.bf16.mxu0 0
  %327 = vmatpush1.bf16.msra.mxu0 0
  %328 = vmatprep.subr.bf16.mxu0 0
  %329 = vmatpush1.bf16.msra.mxu0 0
  %330 = vmatprep.subr.bf16.mxu0 0
  %331 = vmatpush1.bf16.msra.mxu0 0
  %332 = vmatprep.mubr.bf16.mxu0 0
  %333 = vmatmul.mubr.bf16.gmra.mrb[0].mxu0 %v228
  %v334 = vpop.f32.mrb[0].mxu0
  %v335 = vadd.f32 0.0, %v334
  %v336 = vpop.f32.mrb[0].mxu0
  %v337 = vadd.f32 0.0, %v336
  %v338 = vpop.f32.mrb[0].mxu0
  %v339 = vadd.f32 0.0, %v338
  %v340 = vpop.f32.mrb[0].mxu0
  %v341 = vadd.f32 0.0, %v340
  %342 = vmatprep.mubr.bf16.mxu0 0
  %343 = vmatmul.mubr.bf16.gmra.mrb[0].mxu0 %v231
  %v344 = vpop.f32.mrb[0].mxu0
  %v345 = vadd.f32 0.0, %v344
  %v346 = vpop.f32.mrb[0].mxu0
  %v347 = vadd.f32 0.0, %v346
  %v348 = vpop.f32.mrb[0].mxu0
  %v349 = vadd.f32 0.0, %v348
  %v350 = vpop.f32.mrb[0].mxu0
  %v351 = vadd.f32 0.0, %v350
  %352 = vmatprep.mubr.bf16.mxu0 0
  %353 = vmatmul.mubr.bf16.gmra.mrb[0].mxu0 %v234
  %v354 = vpop.f32.mrb[0].mxu0
  %v355 = vadd.f32 0.0, %v354
  %v356 = vpop.f32.mrb[0].mxu0
  %v357 = vadd.f32 0.0, %v356
  %v358 = vpop.f32.mrb[0].mxu0
  %v359 = vadd.f32 0.0, %v358
  %v360 = vpop.f32.mrb[0].mxu0
  %v361 = vadd.f32 0.0, %v360
  %362 = vmatprep.mubr.bf16.mxu0 0
  %363 = vmatmul.mubr.bf16.gmra.mrb[0].mxu0 %v237
  %v364 = vpop.f32.mrb[0].mxu0
  %v365 = vadd.f32 0.0, %v364
  %v366 = vpop.f32.mrb[0].mxu0
  %v367 = vadd.f32 0.0, %v366
  %v368 = vpop.f32.mrb[0].mxu0
  %v369 = vadd.f32 0.0, %v368
  %v370 = vpop.f32.mrb[0].mxu0
  %v371 = vadd.f32 0.0, %v370
  %372 = vmatprep.mubr.bf16.mxu0 0
  %373 = vmatmul.mubr.bf16.gmra.mrb[0].mxu0 %v240
  %v374 = vpop.f32.mrb[0].mxu0
  %v375 = vadd.f32 0.0, %v374
  %v376 = vpop.f32.mrb[0].mxu0
  %v377 = vadd.f32 0.0, %v376
  %v378 = vpop.f32.mrb[0].mxu0
  %v379 = vadd.f32 0.0, %v378
  %v380 = vpop.f32.mrb[0].mxu0
  %v381 = vadd.f32 0.0, %v380
  %382 = vmatprep.mubr.bf16.mxu0 0
  %383 = vmatmul.mubr.bf16.gmra.mrb[0].mxu0 %v243
  %v384 = vpop.f32.mrb[0].mxu0
  %v385 = vadd.f32 0.0, %v384
  %v386 = vpop.f32.mrb[0].mxu0
  %v387 = vadd.f32 0.0, %v386
  %v388 = vpop.f32.mrb[0].mxu0
  %v389 = vadd.f32 0.0, %v388
  %v390 = vpop.f32.mrb[0].mxu0
  %v391 = vadd.f32 0.0, %v390
  %392 = vmatprep.mubr.bf16.mxu0 0
  %393 = vmatmul.mubr.bf16.gmra.mrb[0].mxu0 %v246
  %v394 = vpop.f32.mrb[0].mxu0
  %v395 = vadd.f32 0.0, %v394
  %v396 = vpop.f32.mrb[0].mxu0
  %v397 = vadd.f32 0.0, %v396
  %v398 = vpop.f32.mrb[0].mxu0
  %v399 = vadd.f32 0.0, %v398
  %v400 = vpop.f32.mrb[0].mxu0
  %v401 = vadd.f32 0.0, %v400
  %402 = vmatprep.mubr.bf16.mxu0 0
  %403 = vmatmul.mubr.bf16.gmra.mrb[0].mxu0 %v249
  %v404 = vpop.f32.mrb[0].mxu0
  %v405 = vadd.f32 0.0, %v404
  %v406 = vpop.f32.mrb[0].mxu0
  %v407 = vadd.f32 0.0, %v406
  %v408 = vpop.f32.mrb[0].mxu0
  %v409 = vadd.f32 0.0, %v408
  %v410 = vpop.f32.mrb[0].mxu0
  %v411 = vadd.f32 0.0, %v410
  %412 = vmatprep.mubr.bf16.mxu0 0
  %413 = vmatmul.mubr.bf16.gmra.mrb[0].mxu0 %v252
  %v414 = vpop.f32.mrb[0].mxu0
  %v415 = vadd.f32 0.0, %v414
  %v416 = vpop.f32.mrb[0].mxu0
  %v417 = vadd.f32 0.0, %v416
  %v418 = vpop.f32.mrb[0].mxu0
  %v419 = vadd.f32 0.0, %v418
  %v420 = vpop.f32.mrb[0].mxu0
  %v421 = vadd.f32 0.0, %v420
  %422 = vmatprep.mubr.bf16.mxu0 0
  %423 = vmatmul.mubr.bf16.gmra.mrb[0].mxu0 %v255
  %v424 = vpop.f32.mrb[0].mxu0
  %v425 = vadd.f32 0.0, %v424
  %v426 = vpop.f32.mrb[0].mxu0
  %v427 = vadd.f32 0.0, %v426
  %v428 = vpop.f32.mrb[0].mxu0
  %v429 = vadd.f32 0.0, %v428
  %v430 = vpop.f32.mrb[0].mxu0
  %v431 = vadd.f32 0.0, %v430
  %432 = vmatprep.mubr.bf16.mxu0 0
  %433 = vmatmul.mubr.bf16.gmra.mrb[0].mxu0 %v258
  %v434 = vpop.f32.mrb[0].mxu0
  %v435 = vadd.f32 0.0, %v434
  %v436 = vpop.f32.mrb[0].mxu0
  %v437 = vadd.f32 0.0, %v436
  %v438 = vpop.f32.mrb[0].mxu0
  %v439 = vadd.f32 0.0, %v438
  %v440 = vpop.f32.mrb[0].mxu0
  %v441 = vadd.f32 0.0, %v440
  %442 = vmatprep.mubr.bf16.mxu0 0
  %443 = vmatmul.mubr.bf16.gmra.mrb[0].mxu0 %v261
  %v444 = vpop.f32.mrb[0].mxu0
  %v445 = vadd.f32 0.0, %v444
  %v446 = vpop.f32.mrb[0].mxu0
  %v447 = vadd.f32 0.0, %v446
  %v448 = vpop.f32.mrb[0].mxu0
  %v449 = vadd.f32 0.0, %v448
  %v450 = vpop.f32.mrb[0].mxu0
  %v451 = vadd.f32 0.0, %v450
  %452 = vmatprep.mubr.bf16.mxu0 0
  %453 = vmatmul.mubr.bf16.gmra.mrb[0].mxu0 %v264
  %v454 = vpop.f32.mrb[0].mxu0
  %v455 = vadd.f32 0.0, %v454
  %v456 = vpop.f32.mrb[0].mxu0
  %v457 = vadd.f32 0.0, %v456
  %v458 = vpop.f32.mrb[0].mxu0
  %v459 = vadd.f32 0.0, %v458
  %v460 = vpop.f32.mrb[0].mxu0
  %v461 = vadd.f32 0.0, %v460
  %462 = vmatprep.mubr.bf16.mxu0 0
  %463 = vmatmul.mubr.bf16.gmra.mrb[0].mxu0 %v267
  %v464 = vpop.f32.mrb[0].mxu0
  %v465 = vadd.f32 0.0, %v464
  %v466 = vpop.f32.mrb[0].mxu0
  %v467 = vadd.f32 0.0, %v466
  %v468 = vpop.f32.mrb[0].mxu0
  %v469 = vadd.f32 0.0, %v468
  %v470 = vpop.f32.mrb[0].mxu0
  %v471 = vadd.f32 0.0, %v470
  %472 = vmatprep.mubr.bf16.mxu0 0
  %473 = vmatmul.mubr.bf16.gmra.mrb[0].mxu0 %v270
  %v474 = vpop.f32.mrb[0].mxu0
  %v475 = vadd.f32 0.0, %v474
  %v476 = vpop.f32.mrb[0].mxu0
  %v477 = vadd.f32 0.0, %v476
  %v478 = vpop.f32.mrb[0].mxu0
  %v479 = vadd.f32 0.0, %v478
  %v480 = vpop.f32.mrb[0].mxu0
  %v481 = vadd.f32 0.0, %v480
  %482 = vmatprep.mubr.bf16.mxu0 0
  %483 = vmatmul.mubr.bf16.gmra.mrb[0].mxu0 %v273
  %v484 = vpop.f32.mrb[0].mxu0
  %v485 = vadd.f32 0.0, %v484
  %v486 = vpop.f32.mrb[0].mxu0
  %v487 = vadd.f32 0.0, %v486
  %v488 = vpop.f32.mrb[0].mxu0
  %v489 = vadd.f32 0.0, %v488
  %v490 = vpop.f32.mrb[0].mxu0
  %v491 = vadd.f32 0.0, %v490
  %492 = vmatprep.mubr.bf16.mxu0 0
  %493 = vmatmul.mubr.bf16.gmra.mrb[0].mxu0 %v276
  %v494 = vpop.f32.mrb[0].mxu0
  %v495 = vadd.f32 0.0, %v494
  %v496 = vpop.f32.mrb[0].mxu0
  %v497 = vadd.f32 0.0, %v496
  %v498 = vpop.f32.mrb[0].mxu0
  %v499 = vadd.f32 0.0, %v498
  %v500 = vpop.f32.mrb[0].mxu0
  %v501 = vadd.f32 0.0, %v500
  %502 = vmatprep.mubr.bf16.mxu0 0
  %503 = vmatmul.mubr.bf16.gmra.mrb[0].mxu0 %v279
  %v504 = vpop.f32.mrb[0].mxu0
  %v505 = vadd.f32 0.0, %v504
  %v506 = vpop.f32.mrb[0].mxu0
  %v507 = vadd.f32 0.0, %v506
  %v508 = vpop.f32.mrb[0].mxu0
  %v509 = vadd.f32 0.0, %v508
  %v510 = vpop.f32.mrb[0].mxu0
  %v511 = vadd.f32 0.0, %v510
  %512 = vmatprep.mubr.bf16.mxu0 0
  %513 = vmatmul.mubr.bf16.gmra.mrb[0].mxu0 %v282
  %v514 = vpop.f32.mrb[0].mxu0
  %v515 = vadd.f32 0.0, %v514
  %v516 = vpop.f32.mrb[0].mxu0
  %v517 = vadd.f32 0.0, %v516
  %v518 = vpop.f32.mrb[0].mxu0
  %v519 = vadd.f32 0.0, %v518
  %v520 = vpop.f32.mrb[0].mxu0
  %v521 = vadd.f32 0.0, %v520
  %522 = vmatprep.mubr.bf16.mxu0 0
  %523 = vmatmul.mubr.bf16.gmra.mrb[0].mxu0 %v285
  %v524 = vpop.f32.mrb[0].mxu0
  %v525 = vadd.f32 0.0, %v524
  %v526 = vpop.f32.mrb[0].mxu0
  %v527 = vadd.f32 0.0, %v526
  %v528 = vpop.f32.mrb[0].mxu0
  %v529 = vadd.f32 0.0, %v528
  %v530 = vpop.f32.mrb[0].mxu0
  %v531 = vadd.f32 0.0, %v530
  %532 = vmatprep.mubr.bf16.mxu0 0
  %533 = vmatmul.mubr.bf16.gmra.mrb[0].mxu0 %v288
  %v534 = vpop.f32.mrb[0].mxu0
  %v535 = vadd.f32 0.0, %v534
  %v536 = vpop.f32.mrb[0].mxu0
  %v537 = vadd.f32 0.0, %v536
  %v538 = vpop.f32.mrb[0].mxu0
  %v539 = vadd.f32 0.0, %v538
  %v540 = vpop.f32.mrb[0].mxu0
  %v541 = vadd.f32 0.0, %v540
  %542 = vmatprep.mubr.bf16.mxu0 0
  %543 = vmatmul.mubr.bf16.gmra.mrb[0].mxu0 %v291
  %v544 = vpop.f32.mrb[0].mxu0
  %v545 = vadd.f32 0.0, %v544
  %v546 = vpop.f32.mrb[0].mxu0
  %v547 = vadd.f32 0.0, %v546
  %v548 = vpop.f32.mrb[0].mxu0
  %v549 = vadd.f32 0.0, %v548
  %v550 = vpop.f32.mrb[0].mxu0
  %v551 = vadd.f32 0.0, %v550
  %552 = vdwg.mxu0
  %553 = vst [vmem:[%s3] sm:$0xff] %v335
  %554 = vst [vmem:[%s3 + $0x8] sm:$0xff] %v337
  %555 = vst [vmem:[%s3 + $0x10] sm:$0xff] %v339
  %556 = vst [vmem:[%s3 + $0x18] sm:$0xff] %v341
  %557 = vst [vmem:[%s3 + $0x20] sm:$0xff] %v345
  %558 = vst [vmem:[%s3 + $0x28] sm:$0xff] %v347
  %559 = vst [vmem:[%s3 + $0x30] sm:$0xff] %v349
  %560 = vst [vmem:[%s3 + $0x38] sm:$0xff] %v351
  %561 = vst [vmem:[%s3 + $0x40] sm:$0xff] %v355
  %562 = vst [vmem:[%s3 + $0x48] sm:$0xff] %v357
  %563 = vst [vmem:[%s3 + $0x50] sm:$0xff] %v359
  %564 = vst [vmem:[%s3 + $0x58] sm:$0xff] %v361
  %565 = vst [vmem:[%s3 + $0x60] sm:$0xff] %v365
  %566 = vst [vmem:[%s3 + $0x68] sm:$0xff] %v367
  %567 = vst [vmem:[%s3 + $0x70] sm:$0xff] %v369
  %568 = vst [vmem:[%s3 + $0x78] sm:$0xff] %v371
  %569 = vst [vmem:[%s3 + $0x80] sm:$0xff] %v375
  %570 = vst [vmem:[%s3 + $0x88] sm:$0xff] %v377
  %571 = vst [vmem:[%s3 + $0x90] sm:$0xff] %v379
  %572 = vst [vmem:[%s3 + $0x98] sm:$0xff] %v381
  %573 = vst [vmem:[%s3 + $0xa0] sm:$0xff] %v385
  %574 = vst [vmem:[%s3 + $0xa8] sm:$0xff] %v387
  %575 = vst [vmem:[%s3 + $0xb0] sm:$0xff] %v389
  %576 = vst [vmem:[%s3 + $0xb8] sm:$0xff] %v391
  %577 = vst [vmem:[%s3 + $0xc0] sm:$0xff] %v395
  %578 = vst [vmem:[%s3 + $0xc8] sm:$0xff] %v397
  %579 = vst [vmem:[%s3 + $0xd0] sm:$0xff] %v399
  %580 = vst [vmem:[%s3 + $0xd8] sm:$0xff] %v401
  %581 = vst [vmem:[%s3 + $0xe0] sm:$0xff] %v405
  %582 = vst [vmem:[%s3 + $0xe8] sm:$0xff] %v407
  %583 = vst [vmem:[%s3 + $0xf0] sm:$0xff] %v409
  %584 = vst [vmem:[%s3 + $0xf8] sm:$0xff] %v411
  %585 = vst [vmem:[%s3 + $0x100] sm:$0xff] %v415
  %586 = vst [vmem:[%s3 + $0x108] sm:$0xff] %v417
  %587 = vst [vmem:[%s3 + $0x110] sm:$0xff] %v419
  %588 = vst [vmem:[%s3 + $0x118] sm:$0xff] %v421
  %589 = vst [vmem:[%s3 + $0x120] sm:$0xff] %v425
  %590 = vst [vmem:[%s3 + $0x128] sm:$0xff] %v427
  %591 = vst [vmem:[%s3 + $0x130] sm:$0xff] %v429
  %592 = vst [vmem:[%s3 + $0x138] sm:$0xff] %v431
  %593 = vst [vmem:[%s3 + $0x140] sm:$0xff] %v435
  %594 = vst [vmem:[%s3 + $0x148] sm:$0xff] %v437
  %595 = vst [vmem:[%s3 + $0x150] sm:$0xff] %v439
  %596 = vst [vmem:[%s3 + $0x158] sm:$0xff] %v441
  %597 = vst [vmem:[%s3 + $0x160] sm:$0xff] %v445
  %598 = vst [vmem:[%s3 + $0x168] sm:$0xff] %v447
  %599 = vst [vmem:[%s3 + $0x170] sm:$0xff] %v449
  %600 = vst [vmem:[%s3 + $0x178] sm:$0xff] %v451
  %601 = vst [vmem:[%s3 + $0x180] sm:$0xff] %v455
  %602 = vst [vmem:[%s3 + $0x188] sm:$0xff] %v457
  %603 = vst [vmem:[%s3 + $0x190] sm:$0xff] %v459
  %604 = vst [vmem:[%s3 + $0x198] sm:$0xff] %v461
  %605 = vst [vmem:[%s3 + $0x1a0] sm:$0xff] %v465
  %606 = vst [vmem:[%s3 + $0x1a8] sm:$0xff] %v467
  %607 = vst [vmem:[%s3 + $0x1b0] sm:$0xff] %v469
  %608 = vst [vmem:[%s3 + $0x1b8] sm:$0xff] %v471
  %609 = vst [vmem:[%s3 + $0x1c0] sm:$0xff] %v475
  %610 = vst [vmem:[%s3 + $0x1c8] sm:$0xff] %v477
  %611 = vst [vmem:[%s3 + $0x1d0] sm:$0xff] %v479
  %612 = vst [vmem:[%s3 + $0x1d8] sm:$0xff] %v481
  %613 = vst [vmem:[%s3 + $0x1e0] sm:$0xff] %v485
  %614 = vst [vmem:[%s3 + $0x1e8] sm:$0xff] %v487
  %615 = vst [vmem:[%s3 + $0x1f0] sm:$0xff] %v489
  %616 = vst [vmem:[%s3 + $0x1f8] sm:$0xff] %v491
  %617 = vst [vmem:[%s3 + $0x200] sm:$0xff] %v495
  %618 = vst [vmem:[%s3 + $0x208] sm:$0xff] %v497
  %619 = vst [vmem:[%s3 + $0x210] sm:$0xff] %v499
  %620 = vst [vmem:[%s3 + $0x218] sm:$0xff] %v501
  %621 = vst [vmem:[%s3 + $0x220] sm:$0xff] %v505
  %622 = vst [vmem:[%s3 + $0x228] sm:$0xff] %v507
  %623 = vst [vmem:[%s3 + $0x230] sm:$0xff] %v509
  %624 = vst [vmem:[%s3 + $0x238] sm:$0xff] %v511
  %625 = vst [vmem:[%s3 + $0x240] sm:$0xff] %v515
  %626 = vst [vmem:[%s3 + $0x248] sm:$0xff] %v517
  %627 = vst [vmem:[%s3 + $0x250] sm:$0xff] %v519
  %628 = vst [vmem:[%s3 + $0x258] sm:$0xff] %v521
  %629 = vst [vmem:[%s3 + $0x260] sm:$0xff] %v525
  %630 = vst [vmem:[%s3 + $0x268] sm:$0xff] %v527
  %631 = vst [vmem:[%s3 + $0x270] sm:$0xff] %v529
  %632 = vst [vmem:[%s3 + $0x278] sm:$0xff] %v531
  %633 = vst [vmem:[%s3 + $0x280] sm:$0xff] %v535
  %634 = vst [vmem:[%s3 + $0x288] sm:$0xff] %v537
  %635 = vst [vmem:[%s3 + $0x290] sm:$0xff] %v539
  %636 = vst [vmem:[%s3 + $0x298] sm:$0xff] %v541
  %637 = vst [vmem:[%s3 + $0x2a0] sm:$0xff] %v545
  %638 = vst [vmem:[%s3 + $0x2a8] sm:$0xff] %v547
  %639 = vst [vmem:[%s3 + $0x2b0] sm:$0xff] %v549
  %640 = vst [vmem:[%s3 + $0x2b8] sm:$0xff] %v551
  // Predicated region
  $region14: #{pixel_decoder_forward.6} parent=0 // pred_check
    _
  $region15: #{pixel_decoder_forward.6} parent=0 // pred_check_branch
    %642 = sbr.rel (0) target = $region17
  $region16: #{pixel_decoder_forward.6} parent=0 // pred_region
    _
  $region17: #{pixel_decoder_forward.6} parent=0 // pred_fallthru
    _
  // Predicated region
  $region18: #{pixel_decoder_forward.6} parent=0 // pred_check
    _
  $region19: #{pixel_decoder_forward.6} parent=0 // pred_check_branch
    %644 = sbr.rel (0) target = $region21
  $region20: #{pixel_decoder_forward.6} parent=0 // pred_region
    _
  $region21: #{pixel_decoder_forward.6} parent=0 // pred_fallthru
    _

// kernel: pixel_decoder_forward.7
$region0: #{pixel_decoder_forward.7}
  #allocation0 [shape = 'u32[]', space=smem, size = 0x4, offset = 0x4, fixed_abs, tag = 'smem constant byte address 0x4 - core index']
  #allocation1 [shape = 'u32[144,128]{1,0:T(1,128)}', space=vmem, size = 0x12000, scoped, tag = 'internal scratch']
  %s0 = inlined_call_operand.vmem [shape: bf16[1824,8], index: 0, kind: input, shape index: {}]
  %s1 = inlined_call_operand.vmem [shape: f32[1,8], index: 1, kind: input, shape index: {}]
  %s2 = inlined_call_operand.vmem [shape: bf16[8,128], index: 2, kind: input, shape index: {}]
  %s3 = inlined_call_operand.vmem [shape: f32[1824,128], index: 3, kind: output, shape index: {}]
  %s4 = sld [smem:[#allocation0]]
  $region45: #{pixel_decoder_forward.7} parent=0
    _
  %s6 = ssub.s32 1, %s4
  %s7 = scalar_select 0, %s6, %s4
  loop: start=0, step=1, limit=4
  $region2: #{pixel_decoder_forward.7} parent=0 // loop_pre_header
    _
  $region3: #{pixel_decoder_forward.7} parent=0 // loop_header
    %s9 = sphi 0, %s13
    %p10 = scmp.ge.s32.totalorder %s9, 4
    %s19 = sphi 0, %s21
    %s22 = sphi 0, %s19
    %s23 = sphi 0, %s22
    %s39 = sphi 0, %s23
    %s43 = sphi 0, %s43
    %s45 = sphi 0, %s43
    %s46 = sphi 0, %s45
    %s60 = sphi 0, %s46
    %s64 = sphi 0, %s64
    %s66 = sphi 0, %s64
    %s67 = sphi 0, %s66
    %s81 = sphi 0, %s67
    %s87 = sphi 0, %s89
    %s90 = sphi 0, %s87
    %s91 = sphi 0, %s90
    %s107 = sphi 0, %s91
  $region4: #{pixel_decoder_forward.7} parent=0 // loop_header_branch
    %12 = sbr.rel (%p10) target = $region8
  $region5: #{pixel_decoder_forward.7} parent=0 // loop_body
    %s14 = ssub.s32 %s9, 1
    %s15 = ssub.s32 %s9, 2
    %s16 = sadd.s32 %s9, 1
    %s17 = ssub.s32 %s9, %s16
    %p18 = scmp.eq.s32.totalorder %s17, 0
    %s20 = sadd.s32 %s19, 1
    %s21 = scalar_select %p18, %s19, %s20
    %p24 = pneg %p18
    %p25 = scmp.eq.s32.totalorder %s9, 1
    %p26 = por %p24, %p25
    %p27 = scmp.ne.s32.totalorder %s19, %s22
    %p28 = scmp.eq.s32.totalorder %s9, 0
    %p29 = por %p27, %p28
    %p30 = scmp.ne.s32.totalorder %s19, %s22
    %p31 = scmp.eq.s32.totalorder %s14, 1
    %p32 = por %p30, %p31
    %p33 = scmp.ne.s32.totalorder %s22, %s23
    %p34 = scmp.eq.s32.totalorder %s14, 0
    %p35 = por %p33, %p34
    %p36 = scmp.ne.s32.totalorder %s22, %s23
    %p37 = scmp.eq.s32.totalorder %s15, 1
    %p38 = por %p36, %p37
    %p40 = scmp.ne.s32.totalorder %s23, %s39
    %p41 = scmp.eq.s32.totalorder %s15, 0
    %p42 = por %p40, %p41
    %s44 = sadd.s32 %s43, 1
    %p47 = scmp.eq.s32.totalorder %s9, 1
    %p48 = scmp.ne.s32.totalorder %s43, %s45
    %p49 = scmp.eq.s32.totalorder %s9, 0
    %p50 = por %p48, %p49
    %p51 = scmp.ne.s32.totalorder %s43, %s45
    %p52 = scmp.eq.s32.totalorder %s14, 1
    %p53 = por %p51, %p52
    %p54 = scmp.ne.s32.totalorder %s45, %s46
    %p55 = scmp.eq.s32.totalorder %s14, 0
    %p56 = por %p54, %p55
    %p57 = scmp.ne.s32.totalorder %s45, %s46
    %p58 = scmp.eq.s32.totalorder %s15, 1
    %p59 = por %p57, %p58
    %p61 = scmp.ne.s32.totalorder %s46, %s60
    %p62 = scmp.eq.s32.totalorder %s15, 0
    %p63 = por %p61, %p62
    %s65 = sadd.s32 %s64, 1
    %p68 = scmp.eq.s32.totalorder %s9, 1
    %p69 = scmp.ne.s32.totalorder %s64, %s66
    %p70 = scmp.eq.s32.totalorder %s9, 0
    %p71 = por %p69, %p70
    %p72 = scmp.ne.s32.totalorder %s64, %s66
    %p73 = scmp.eq.s32.totalorder %s14, 1
    %p74 = por %p72, %p73
    %p75 = scmp.ne.s32.totalorder %s66, %s67
    %p76 = scmp.eq.s32.totalorder %s14, 0
    %p77 = por %p75, %p76
    %p78 = scmp.ne.s32.totalorder %s66, %s67
    %p79 = scmp.eq.s32.totalorder %s15, 1
    %p80 = por %p78, %p79
    %p82 = scmp.ne.s32.totalorder %s67, %s81
    %p83 = scmp.eq.s32.totalorder %s15, 0
    %p84 = por %p82, %p83
    %s85 = ssub.s32 %s9, %s16
    %p86 = scmp.eq.s32.totalorder %s85, 0
    %s88 = sadd.s32 %s87, 1
    %s89 = scalar_select %p86, %s87, %s88
    %p92 = pneg %p86
    %p93 = scmp.eq.s32.totalorder %s9, 1
    %p94 = por %p92, %p93
    %p95 = scmp.ne.s32.totalorder %s87, %s90
    %p96 = scmp.eq.s32.totalorder %s9, 0
    %p97 = por %p95, %p96
    %p98 = scmp.ne.s32.totalorder %s87, %s90
    %p99 = scmp.eq.s32.totalorder %s14, 1
    %p100 = por %p98, %p99
    %p101 = scmp.ne.s32.totalorder %s90, %s91
    %p102 = scmp.eq.s32.totalorder %s14, 0
    %p103 = por %p101, %p102
    %p104 = scmp.ne.s32.totalorder %s90, %s91
    %p105 = scmp.eq.s32.totalorder %s15, 1
    %p106 = por %p104, %p105
    %p108 = scmp.ne.s32.totalorder %s91, %s107
    %p109 = scmp.eq.s32.totalorder %s15, 0
    %p110 = por %p108, %p109
    %p111 = scmp.le.s32.totalorder 1, %s9
    %p112 = scmp.lt.s32.totalorder %s9, 3
    %p113 = pnand %p111, %p112
    %p114 = pneg %p113
    // Predicated region
    $region9: #{pixel_decoder_forward.7} parent=5 // pred_check
      _
    $region10: #{pixel_decoder_forward.7} parent=5 // pred_check_branch
      %116 = sbr.rel (%p113) target = $region12
    $region11: #{pixel_decoder_forward.7} parent=5 // pred_region
      %s117 = ssub.s32 %s9, 1
      // Predicated region
      $region13: #{pixel_decoder_forward.7} parent=11 // pred_check
        %p118 = pneg %p56
      $region14: #{pixel_decoder_forward.7} parent=11 // pred_check_branch
        %120 = sbr.rel (%p118) target = $region16
      $region15: #{pixel_decoder_forward.7} parent=11 // pred_region
        _
      $region16: #{pixel_decoder_forward.7} parent=11 // pred_fallthru
        _
      // Predicated region
      $region17: #{pixel_decoder_forward.7} parent=11 // pred_check
        %p121 = pneg %p77
      $region18: #{pixel_decoder_forward.7} parent=11 // pred_check_branch
        %123 = sbr.rel (%p121) target = $region20
      $region19: #{pixel_decoder_forward.7} parent=11 // pred_region
        _
      $region20: #{pixel_decoder_forward.7} parent=11 // pred_fallthru
        _
    $region12: #{pixel_decoder_forward.7} parent=5 // pred_fallthru
      _
    %p124 = scmp.lt.s32.totalorder %s9, 2
    // Predicated region
    $region21: #{pixel_decoder_forward.7} parent=5 // pred_check
      %p125 = pneg %p124
    $region22: #{pixel_decoder_forward.7} parent=5 // pred_check_branch
      %127 = sbr.rel (%p125) target = $region24
    $region23: #{pixel_decoder_forward.7} parent=5 // pred_region
      // Predicated region
      $region25: #{pixel_decoder_forward.7} parent=23 // pred_check
        %p128 = pneg %p29
      $region26: #{pixel_decoder_forward.7} parent=23 // pred_check_branch
        %130 = sbr.rel (%p128) target = $region28
      $region27: #{pixel_decoder_forward.7} parent=23 // pred_region
        %s131 = smul.u32 114, %s9
        %p132 = scmp.lt.s32.totalorder %s131, 227
        %s133 = scalar_select %p132, %s131, 227
        %s134 = smul.addr %s133, 4
        %s135 = scalar_lea.vmem %s0, %s134
        %s136 = smul.u32 114, %s9
      $region28: #{pixel_decoder_forward.7} parent=23 // pred_fallthru
        _
    $region24: #{pixel_decoder_forward.7} parent=5 // pred_fallthru
      _
    %p137 = scmp.le.s32.totalorder 1, %s9
    %p138 = scmp.lt.s32.totalorder %s9, 3
    %p139 = pnand %p137, %p138
    %p140 = pneg %p139
    // Predicated region
    $region29: #{pixel_decoder_forward.7} parent=5 // pred_check
      _
    $region30: #{pixel_decoder_forward.7} parent=5 // pred_check_branch
      %142 = sbr.rel (%p139) target = $region32
    $region31: #{pixel_decoder_forward.7} parent=5 // pred_region
      %s143 = ssub.s32 %s9, 1
      %s144 = smul.u32 114, %s14
      %p145 = scmp.lt.s32.totalorder %s144, 227
      %s146 = scalar_select %p145, %s144, 227
      %s147 = smul.addr %s146, 4
      %s148 = scalar_lea.vmem %s0, %s147
      %p149 = pneg %p35
      %p150 = pneg %p32
      %p151 = pneg %p56
      %p152 = pneg %p53
      %p153 = pneg %p77
      %p154 = pneg %p74
      %p155 = pneg %p103
      %p156 = pneg %p100
      %s157 = smul.u32 114, %s14
      %p158 = scmp.lt.s32.totalorder %s157, 227
      %s159 = scalar_select %p158, %s157, 227
      %s160 = smul.addr %s159, 8
      %s161 = scalar_lea.vmem %s3, %s160
      %s162 = smul.u32 114, %s14
      %p163 = scmp.lt.s32.totalorder %s162, 227
      %s164 = scalar_select %p163, %s162, 227
      %s165 = smul.addr %s164, 4
      %s166 = scalar_lea.vmem %s0, %s165
      %s167 = smul.u32 114, %s14
      %s168 = smul.u32 114, %s14
      %p169 = scmp.lt.s32.totalorder %s168, 227
      %s170 = scalar_select %p169, %s168, 227
      %s171 = smul.addr %s170, 8
      %s172 = scalar_lea.vmem %s3, %s171
      %s173 = smul.u32 114, %s14
      %v175 = vld [vmem:[%s166] sm:$0xf]
      %v176 = vld [vmem:[%s166 + $0x4] sm:$0xf]
      %v177 = vld [vmem:[%s166 + $0x8] sm:$0xf]
      %v178 = vld [vmem:[%s166 + $0xc] sm:$0xf]
      %v179 = vld [vmem:[%s166 + $0x10] sm:$0xf]
      %v180 = vld [vmem:[%s166 + $0x14] sm:$0xf]
      %v181 = vld [vmem:[%s166 + $0x18] sm:$0xf]
      %v182 = vld [vmem:[%s166 + $0x1c] sm:$0xf]
      %v183 = vld [vmem:[%s166 + $0x20] sm:$0xf]
      %v184 = vld [vmem:[%s166 + $0x24] sm:$0xf]
      %v185 = vld [vmem:[%s166 + $0x28] sm:$0xf]
      %v186 = vld [vmem:[%s166 + $0x2c] sm:$0xf]
      %v187 = vld [vmem:[%s166 + $0x30] sm:$0xf]
      %v188 = vld [vmem:[%s166 + $0x34] sm:$0xf]
      %v189 = vld [vmem:[%s166 + $0x38] sm:$0xf]
      %v190 = vld [vmem:[%s166 + $0x3c] sm:$0xf]
      %v191 = vld [vmem:[%s166 + $0x40] sm:$0xf]
      %v192 = vld [vmem:[%s166 + $0x44] sm:$0xf]
      %v193 = vld [vmem:[%s166 + $0x48] sm:$0xf]
      %v194 = vld [vmem:[%s166 + $0x4c] sm:$0xf]
      %v195 = vld [vmem:[%s166 + $0x50] sm:$0xf]
      %v196 = vld [vmem:[%s166 + $0x54] sm:$0xf]
      %v197 = vld [vmem:[%s166 + $0x58] sm:$0xf]
      %v198 = vld [vmem:[%s166 + $0x5c] sm:$0xf]
      %v199 = vld [vmem:[%s166 + $0x60] sm:$0xf]
      %v200 = vld [vmem:[%s166 + $0x64] sm:$0xf]
      %v201 = vld [vmem:[%s166 + $0x68] sm:$0xf]
      %v202 = vld [vmem:[%s166 + $0x6c] sm:$0xf]
      %v203 = vld [vmem:[%s166 + $0x70] sm:$0xf]
      %v204 = vld [vmem:[%s166 + $0x74] sm:$0xf]
      %v205 = vld [vmem:[%s166 + $0x78] sm:$0xf]
      %v206 = vld [vmem:[%s166 + $0x7c] sm:$0xf]
      %v207 = vld [vmem:[%s166 + $0x80] sm:$0xf]
      %v208 = vld [vmem:[%s166 + $0x84] sm:$0xf]
      %v209 = vld [vmem:[%s166 + $0x88] sm:$0xf]
      %v210 = vld [vmem:[%s166 + $0x8c] sm:$0xf]
      %v211 = vld [vmem:[%s166 + $0x90] sm:$0xf]
      %v212 = vld [vmem:[%s166 + $0x94] sm:$0xf]
      %v213 = vld [vmem:[%s166 + $0x98] sm:$0xf]
      %v214 = vld [vmem:[%s166 + $0x9c] sm:$0xf]
      %v215 = vld [vmem:[%s166 + $0xa0] sm:$0xf]
      %v216 = vld [vmem:[%s166 + $0xa4] sm:$0xf]
      %v217 = vld [vmem:[%s166 + $0xa8] sm:$0xf]
      %v218 = vld [vmem:[%s166 + $0xac] sm:$0xf]
      %v219 = vld [vmem:[%s166 + $0xb0] sm:$0xf]
      %v220 = vld [vmem:[%s166 + $0xb4] sm:$0xf]
      %v221 = vld [vmem:[%s166 + $0xb8] sm:$0xf]
      %v222 = vld [vmem:[%s166 + $0xbc] sm:$0xf]
      %v223 = vld [vmem:[%s166 + $0xc0] sm:$0xf]
      %v224 = vld [vmem:[%s166 + $0xc4] sm:$0xf]
      %v225 = vld [vmem:[%s166 + $0xc8] sm:$0xf]
      %v226 = vld [vmem:[%s166 + $0xcc] sm:$0xf]
      %v227 = vld [vmem:[%s166 + $0xd0] sm:$0xf]
      %v228 = vld [vmem:[%s166 + $0xd4] sm:$0xf]
      %v229 = vld [vmem:[%s166 + $0xd8] sm:$0xf]
      %v230 = vld [vmem:[%s166 + $0xdc] sm:$0xf]
      %v231 = vld [vmem:[%s166 + $0xe0] sm:$0xf]
      %v232 = vld [vmem:[%s166 + $0xe4] sm:$0xf]
      %v233 = vld [vmem:[%s166 + $0xe8] sm:$0xf]
      %v234 = vld [vmem:[%s166 + $0xec] sm:$0xf]
      %v235 = vld [vmem:[%s166 + $0xf0] sm:$0xf]
      %v236 = vld [vmem:[%s166 + $0xf4] sm:$0xf]
      %v237 = vld [vmem:[%s166 + $0xf8] sm:$0xf]
      %v238 = vld [vmem:[%s166 + $0xfc] sm:$0xf]
      %v239 = vld [vmem:[%s166 + $0x100] sm:$0xf]
      %v240 = vld [vmem:[%s166 + $0x104] sm:$0xf]
      %v241 = vld [vmem:[%s166 + $0x108] sm:$0xf]
      %v242 = vld [vmem:[%s166 + $0x10c] sm:$0xf]
      %v243 = vld [vmem:[%s166 + $0x110] sm:$0xf]
      %v244 = vld [vmem:[%s166 + $0x114] sm:$0xf]
      %v245 = vld [vmem:[%s166 + $0x118] sm:$0xf]
      %v246 = vld [vmem:[%s166 + $0x11c] sm:$0xf]
      %v247 = vld [vmem:[%s166 + $0x120] sm:$0xf]
      %v248 = vld [vmem:[%s166 + $0x124] sm:$0xf]
      %v249 = vld [vmem:[%s166 + $0x128] sm:$0xf]
      %v250 = vld [vmem:[%s166 + $0x12c] sm:$0xf]
      %v251 = vld [vmem:[%s166 + $0x130] sm:$0xf]
      %v252 = vld [vmem:[%s166 + $0x134] sm:$0xf]
      %v253 = vld [vmem:[%s166 + $0x138] sm:$0xf]
      %v254 = vld [vmem:[%s166 + $0x13c] sm:$0xf]
      %v255 = vld [vmem:[%s166 + $0x140] sm:$0xf]
      %v256 = vld [vmem:[%s166 + $0x144] sm:$0xf]
      %v257 = vld [vmem:[%s166 + $0x148] sm:$0xf]
      %v258 = vld [vmem:[%s166 + $0x14c] sm:$0xf]
      %v259 = vld [vmem:[%s166 + $0x150] sm:$0xf]
      %v260 = vld [vmem:[%s166 + $0x154] sm:$0xf]
      %v261 = vld [vmem:[%s166 + $0x158] sm:$0xf]
      %v262 = vld [vmem:[%s166 + $0x15c] sm:$0xf]
      %v263 = vld [vmem:[%s166 + $0x160] sm:$0xf]
      %v264 = vld [vmem:[%s166 + $0x164] sm:$0xf]
      %v265 = vld [vmem:[%s166 + $0x168] sm:$0xf]
      %v266 = vld [vmem:[%s166 + $0x16c] sm:$0xf]
      %v267 = vld [vmem:[%s166 + $0x170] sm:$0xf]
      %v268 = vld [vmem:[%s166 + $0x174] sm:$0xf]
      %v269 = vld [vmem:[%s166 + $0x178] sm:$0xf]
      %v270 = vld [vmem:[%s166 + $0x17c] sm:$0xf]
      %v271 = vld [vmem:[%s166 + $0x180] sm:$0xf]
      %v272 = vld [vmem:[%s166 + $0x184] sm:$0xf]
      %v273 = vld [vmem:[%s166 + $0x188] sm:$0xf]
      %v274 = vld [vmem:[%s166 + $0x18c] sm:$0xf]
      %v275 = vld [vmem:[%s166 + $0x190] sm:$0xf]
      %v276 = vld [vmem:[%s166 + $0x194] sm:$0xf]
      %v277 = vld [vmem:[%s166 + $0x198] sm:$0xf]
      %v278 = vld [vmem:[%s166 + $0x19c] sm:$0xf]
      %v279 = vld [vmem:[%s166 + $0x1a0] sm:$0xf]
      %v280 = vld [vmem:[%s166 + $0x1a4] sm:$0xf]
      %v281 = vld [vmem:[%s166 + $0x1a8] sm:$0xf]
      %v282 = vld [vmem:[%s166 + $0x1ac] sm:$0xf]
      %v283 = vld [vmem:[%s166 + $0x1b0] sm:$0xf]
      %v284 = vld [vmem:[%s166 + $0x1b4] sm:$0xf]
      %v285 = vld [vmem:[%s166 + $0x1b8] sm:$0xf]
      %v286 = vld [vmem:[%s166 + $0x1bc] sm:$0xf]
      %v287 = vld [vmem:[%s166 + $0x1c0] sm:$0xf]
      %v288 = vld [vmem:[%s166 + $0x1c4] sm:$0xf]
      %v289 = vunpack.c.l.bf16 %v175
      %v290 = vunpack.c.l.bf16 %v176
      %v291 = vunpack.c.l.bf16 %v177
      %v292 = vunpack.c.l.bf16 %v178
      %v293 = vunpack.c.l.bf16 %v179
      %v294 = vunpack.c.l.bf16 %v180
      %v295 = vunpack.c.l.bf16 %v181
      %v296 = vunpack.c.l.bf16 %v182
      %v297 = vunpack.c.l.bf16 %v183
      %v298 = vunpack.c.l.bf16 %v184
      %v299 = vunpack.c.l.bf16 %v185
      %v300 = vunpack.c.l.bf16 %v186
      %v301 = vunpack.c.l.bf16 %v187
      %v302 = vunpack.c.l.bf16 %v188
      %v303 = vunpack.c.l.bf16 %v189
      %v304 = vunpack.c.l.bf16 %v190
      %v305 = vunpack.c.l.bf16 %v191
      %v306 = vunpack.c.l.bf16 %v192
      %v307 = vunpack.c.l.bf16 %v193
      %v308 = vunpack.c.l.bf16 %v194
      %v309 = vunpack.c.l.bf16 %v195
      %v310 = vunpack.c.l.bf16 %v196
      %v311 = vunpack.c.l.bf16 %v197
      %v312 = vunpack.c.l.bf16 %v198
      %v313 = vunpack.c.l.bf16 %v199
      %v314 = vunpack.c.l.bf16 %v200
      %v315 = vunpack.c.l.bf16 %v201
      %v316 = vunpack.c.l.bf16 %v202
      %v317 = vunpack.c.l.bf16 %v203
      %v318 = vunpack.c.l.bf16 %v204
      %v319 = vunpack.c.l.bf16 %v205
      %v320 = vunpack.c.l.bf16 %v206
      %v321 = vunpack.c.l.bf16 %v207
      %v322 = vunpack.c.l.bf16 %v208
      %v323 = vunpack.c.l.bf16 %v209
      %v324 = vunpack.c.l.bf16 %v210
      %v325 = vunpack.c.l.bf16 %v211
      %v326 = vunpack.c.l.bf16 %v212
      %v327 = vunpack.c.l.bf16 %v213
      %v328 = vunpack.c.l.bf16 %v214
      %v329 = vunpack.c.l.bf16 %v215
      %v330 = vunpack.c.l.bf16 %v216
      %v331 = vunpack.c.l.bf16 %v217
      %v332 = vunpack.c.l.bf16 %v218
      %v333 = vunpack.c.l.bf16 %v219
      %v334 = vunpack.c.l.bf16 %v220
      %v335 = vunpack.c.l.bf16 %v221
      %v336 = vunpack.c.l.bf16 %v222
      %v337 = vunpack.c.l.bf16 %v223
      %v338 = vunpack.c.l.bf16 %v224
      %v339 = vunpack.c.l.bf16 %v225
      %v340 = vunpack.c.l.bf16 %v226
      %v341 = vunpack.c.l.bf16 %v227
      %v342 = vunpack.c.l.bf16 %v228
      %v343 = vunpack.c.l.bf16 %v229
      %v344 = vunpack.c.l.bf16 %v230
      %v345 = vunpack.c.l.bf16 %v231
      %v346 = vunpack.c.l.bf16 %v232
      %v347 = vunpack.c.l.bf16 %v233
      %v348 = vunpack.c.l.bf16 %v234
      %v349 = vunpack.c.l.bf16 %v235
      %v350 = vunpack.c.l.bf16 %v236
      %v351 = vunpack.c.l.bf16 %v237
      %v352 = vunpack.c.l.bf16 %v238
      %v353 = vunpack.c.l.bf16 %v239
      %v354 = vunpack.c.l.bf16 %v240
      %v355 = vunpack.c.l.bf16 %v241
      %v356 = vunpack.c.l.bf16 %v242
      %v357 = vunpack.c.l.bf16 %v243
      %v358 = vunpack.c.l.bf16 %v244
      %v359 = vunpack.c.l.bf16 %v245
      %v360 = vunpack.c.l.bf16 %v246
      %v361 = vunpack.c.l.bf16 %v247
      %v362 = vunpack.c.l.bf16 %v248
      %v363 = vunpack.c.l.bf16 %v249
      %v364 = vunpack.c.l.bf16 %v250
      %v365 = vunpack.c.l.bf16 %v251
      %v366 = vunpack.c.l.bf16 %v252
      %v367 = vunpack.c.l.bf16 %v253
      %v368 = vunpack.c.l.bf16 %v254
      %v369 = vunpack.c.l.bf16 %v255
      %v370 = vunpack.c.l.bf16 %v256
      %v371 = vunpack.c.l.bf16 %v257
      %v372 = vunpack.c.l.bf16 %v258
      %v373 = vunpack.c.l.bf16 %v259
      %v374 = vunpack.c.l.bf16 %v260
      %v375 = vunpack.c.l.bf16 %v261
      %v376 = vunpack.c.l.bf16 %v262
      %v377 = vunpack.c.l.bf16 %v263
      %v378 = vunpack.c.l.bf16 %v264
      %v379 = vunpack.c.l.bf16 %v265
      %v380 = vunpack.c.l.bf16 %v266
      %v381 = vunpack.c.l.bf16 %v267
      %v382 = vunpack.c.l.bf16 %v268
      %v383 = vunpack.c.l.bf16 %v269
      %v384 = vunpack.c.l.bf16 %v270
      %v385 = vunpack.c.l.bf16 %v271
      %v386 = vunpack.c.l.bf16 %v272
      %v387 = vunpack.c.l.bf16 %v273
      %v388 = vunpack.c.l.bf16 %v274
      %v389 = vunpack.c.l.bf16 %v275
      %v390 = vunpack.c.l.bf16 %v276
      %v391 = vunpack.c.l.bf16 %v277
      %v392 = vunpack.c.l.bf16 %v278
      %v393 = vunpack.c.l.bf16 %v279
      %v394 = vunpack.c.l.bf16 %v280
      %v395 = vunpack.c.l.bf16 %v281
      %v396 = vunpack.c.l.bf16 %v282
      %v397 = vunpack.c.l.bf16 %v283
      %v398 = vunpack.c.l.bf16 %v284
      %v399 = vunpack.c.l.bf16 %v285
      %v400 = vunpack.c.l.bf16 %v286
      %v401 = vunpack.c.l.bf16 %v287
      %v402 = vunpack.c.l.bf16 %v288
      %v403 = vld [vmem:[%s1] sm:$0x1]
      %v405 = vlaneseq
      %v406 = vshrl.u32 %v405, 7
      %v407 = vsub.s32 0, %v406
      %v408 = vrot.slane %v403, %v407
      %v410 = vadd.f32 %v289, %v408
      %v411 = vadd.f32 %v290, %v408
      %v412 = vadd.f32 %v291, %v408
      %v413 = vadd.f32 %v292, %v408
      %v414 = vadd.f32 %v293, %v408
      %v415 = vadd.f32 %v294, %v408
      %v416 = vadd.f32 %v295, %v408
      %v417 = vadd.f32 %v296, %v408
      %v418 = vadd.f32 %v297, %v408
      %v419 = vadd.f32 %v298, %v408
      %v420 = vadd.f32 %v299, %v408
      %v421 = vadd.f32 %v300, %v408
      %v422 = vadd.f32 %v301, %v408
      %v423 = vadd.f32 %v302, %v408
      %v424 = vadd.f32 %v303, %v408
      %v425 = vadd.f32 %v304, %v408
      %v426 = vadd.f32 %v305, %v408
      %v427 = vadd.f32 %v306, %v408
      %v428 = vadd.f32 %v307, %v408
      %v429 = vadd.f32 %v308, %v408
      %v430 = vadd.f32 %v309, %v408
      %v431 = vadd.f32 %v310, %v408
      %v432 = vadd.f32 %v311, %v408
      %v433 = vadd.f32 %v312, %v408
      %v434 = vadd.f32 %v313, %v408
      %v435 = vadd.f32 %v314, %v408
      %v436 = vadd.f32 %v315, %v408
      %v437 = vadd.f32 %v316, %v408
      %v438 = vadd.f32 %v317, %v408
      %v439 = vadd.f32 %v318, %v408
      %v440 = vadd.f32 %v319, %v408
      %v441 = vadd.f32 %v320, %v408
      %v442 = vadd.f32 %v321, %v408
      %v443 = vadd.f32 %v322, %v408
      %v444 = vadd.f32 %v323, %v408
      %v445 = vadd.f32 %v324, %v408
      %v446 = vadd.f32 %v325, %v408
      %v447 = vadd.f32 %v326, %v408
      %v448 = vadd.f32 %v327, %v408
      %v449 = vadd.f32 %v328, %v408
      %v450 = vadd.f32 %v329, %v408
      %v451 = vadd.f32 %v330, %v408
      %v452 = vadd.f32 %v331, %v408
      %v453 = vadd.f32 %v332, %v408
      %v454 = vadd.f32 %v333, %v408
      %v455 = vadd.f32 %v334, %v408
      %v456 = vadd.f32 %v335, %v408
      %v457 = vadd.f32 %v336, %v408
      %v458 = vadd.f32 %v337, %v408
      %v459 = vadd.f32 %v338, %v408
      %v460 = vadd.f32 %v339, %v408
      %v461 = vadd.f32 %v340, %v408
      %v462 = vadd.f32 %v341, %v408
      %v463 = vadd.f32 %v342, %v408
      %v464 = vadd.f32 %v343, %v408
      %v465 = vadd.f32 %v344, %v408
      %v466 = vadd.f32 %v345, %v408
      %v467 = vadd.f32 %v346, %v408
      %v468 = vadd.f32 %v347, %v408
      %v469 = vadd.f32 %v348, %v408
      %v470 = vadd.f32 %v349, %v408
      %v471 = vadd.f32 %v350, %v408
      %v472 = vadd.f32 %v351, %v408
      %v473 = vadd.f32 %v352, %v408
      %v474 = vadd.f32 %v353, %v408
      %v475 = vadd.f32 %v354, %v408
      %v476 = vadd.f32 %v355, %v408
      %v477 = vadd.f32 %v356, %v408
      %v478 = vadd.f32 %v357, %v408
      %v479 = vadd.f32 %v358, %v408
      %v480 = vadd.f32 %v359, %v408
      %v481 = vadd.f32 %v360, %v408
      %v482 = vadd.f32 %v361, %v408
      %v483 = vadd.f32 %v362, %v408
      %v484 = vadd.f32 %v363, %v408
      %v485 = vadd.f32 %v364, %v408
      %v486 = vadd.f32 %v365, %v408
      %v487 = vadd.f32 %v366, %v408
      %v488 = vadd.f32 %v367, %v408
      %v489 = vadd.f32 %v368, %v408
      %v490 = vadd.f32 %v369, %v408
      %v491 = vadd.f32 %v370, %v408
      %v492 = vadd.f32 %v371, %v408
      %v493 = vadd.f32 %v372, %v408
      %v494 = vadd.f32 %v373, %v408
      %v495 = vadd.f32 %v374, %v408
      %v496 = vadd.f32 %v375, %v408
      %v497 = vadd.f32 %v376, %v408
      %v498 = vadd.f32 %v377, %v408
      %v499 = vadd.f32 %v378, %v408
      %v500 = vadd.f32 %v379, %v408
      %v501 = vadd.f32 %v380, %v408
      %v502 = vadd.f32 %v381, %v408
      %v503 = vadd.f32 %v382, %v408
      %v504 = vadd.f32 %v383, %v408
      %v505 = vadd.f32 %v384, %v408
      %v506 = vadd.f32 %v385, %v408
      %v507 = vadd.f32 %v386, %v408
      %v508 = vadd.f32 %v387, %v408
      %v509 = vadd.f32 %v388, %v408
      %v510 = vadd.f32 %v389, %v408
      %v511 = vadd.f32 %v390, %v408
      %v512 = vadd.f32 %v391, %v408
      %v513 = vadd.f32 %v392, %v408
      %v514 = vadd.f32 %v393, %v408
      %v515 = vadd.f32 %v394, %v408
      %v516 = vadd.f32 %v395, %v408
      %v517 = vadd.f32 %v396, %v408
      %v518 = vadd.f32 %v397, %v408
      %v519 = vadd.f32 %v398, %v408
      %v520 = vadd.f32 %v399, %v408
      %v521 = vadd.f32 %v400, %v408
      %v522 = vadd.f32 %v401, %v408
      %v523 = vadd.f32 %v402, %v408
      %v524 = vmax.f32 %v410, 0.0
      %v525 = vmax.f32 %v411, 0.0
      %v526 = vmax.f32 %v412, 0.0
      %v527 = vmax.f32 %v413, 0.0
      %v528 = vmax.f32 %v414, 0.0
      %v529 = vmax.f32 %v415, 0.0
      %v530 = vmax.f32 %v416, 0.0
      %v531 = vmax.f32 %v417, 0.0
      %v532 = vmax.f32 %v418, 0.0
      %v533 = vmax.f32 %v419, 0.0
      %v534 = vmax.f32 %v420, 0.0
      %v535 = vmax.f32 %v421, 0.0
      %v536 = vmax.f32 %v422, 0.0
      %v537 = vmax.f32 %v423, 0.0
      %v538 = vmax.f32 %v424, 0.0
      %v539 = vmax.f32 %v425, 0.0
      %v540 = vmax.f32 %v426, 0.0
      %v541 = vmax.f32 %v427, 0.0
      %v542 = vmax.f32 %v428, 0.0
      %v543 = vmax.f32 %v429, 0.0
      %v544 = vmax.f32 %v430, 0.0
      %v545 = vmax.f32 %v431, 0.0
      %v546 = vmax.f32 %v432, 0.0
      %v547 = vmax.f32 %v433, 0.0
      %v548 = vmax.f32 %v434, 0.0
      %v549 = vmax.f32 %v435, 0.0
      %v550 = vmax.f32 %v436, 0.0
      %v551 = vmax.f32 %v437, 0.0
      %v552 = vmax.f32 %v438, 0.0
      %v553 = vmax.f32 %v439, 0.0
      %v554 = vmax.f32 %v440, 0.0
      %v555 = vmax.f32 %v441, 0.0
      %v556 = vmax.f32 %v442, 0.0
      %v557 = vmax.f32 %v443, 0.0
      %v558 = vmax.f32 %v444, 0.0
      %v559 = vmax.f32 %v445, 0.0
      %v560 = vmax.f32 %v446, 0.0
      %v561 = vmax.f32 %v447, 0.0
      %v562 = vmax.f32 %v448, 0.0
      %v563 = vmax.f32 %v449, 0.0
      %v564 = vmax.f32 %v450, 0.0
      %v565 = vmax.f32 %v451, 0.0
      %v566 = vmax.f32 %v452, 0.0
      %v567 = vmax.f32 %v453, 0.0
      %v568 = vmax.f32 %v454, 0.0
      %v569 = vmax.f32 %v455, 0.0
      %v570 = vmax.f32 %v456, 0.0
      %v571 = vmax.f32 %v457, 0.0
      %v572 = vmax.f32 %v458, 0.0
      %v573 = vmax.f32 %v459, 0.0
      %v574 = vmax.f32 %v460, 0.0
      %v575 = vmax.f32 %v461, 0.0
      %v576 = vmax.f32 %v462, 0.0
      %v577 = vmax.f32 %v463, 0.0
      %v578 = vmax.f32 %v464, 0.0
      %v579 = vmax.f32 %v465, 0.0
      %v580 = vmax.f32 %v466, 0.0
      %v581 = vmax.f32 %v467, 0.0
      %v582 = vmax.f32 %v468, 0.0
      %v583 = vmax.f32 %v469, 0.0
      %v584 = vmax.f32 %v470, 0.0
      %v585 = vmax.f32 %v471, 0.0
      %v586 = vmax.f32 %v472, 0.0
      %v587 = vmax.f32 %v473, 0.0
      %v588 = vmax.f32 %v474, 0.0
      %v589 = vmax.f32 %v475, 0.0
      %v590 = vmax.f32 %v476, 0.0
      %v591 = vmax.f32 %v477, 0.0
      %v592 = vmax.f32 %v478, 0.0
      %v593 = vmax.f32 %v479, 0.0
      %v594 = vmax.f32 %v480, 0.0
      %v595 = vmax.f32 %v481, 0.0
      %v596 = vmax.f32 %v482, 0.0
      %v597 = vmax.f32 %v483, 0.0
      %v598 = vmax.f32 %v484, 0.0
      %v599 = vmax.f32 %v485, 0.0
      %v600 = vmax.f32 %v486, 0.0
      %v601 = vmax.f32 %v487, 0.0
      %v602 = vmax.f32 %v488, 0.0
      %v603 = vmax.f32 %v489, 0.0
      %v604 = vmax.f32 %v490, 0.0
      %v605 = vmax.f32 %v491, 0.0
      %v606 = vmax.f32 %v492, 0.0
      %v607 = vmax.f32 %v493, 0.0
      %v608 = vmax.f32 %v494, 0.0
      %v609 = vmax.f32 %v495, 0.0
      %v610 = vmax.f32 %v496, 0.0
      %v611 = vmax.f32 %v497, 0.0
      %v612 = vmax.f32 %v498, 0.0
      %v613 = vmax.f32 %v499, 0.0
      %v614 = vmax.f32 %v500, 0.0
      %v615 = vmax.f32 %v501, 0.0
      %v616 = vmax.f32 %v502, 0.0
      %v617 = vmax.f32 %v503, 0.0
      %v618 = vmax.f32 %v504, 0.0
      %v619 = vmax.f32 %v505, 0.0
      %v620 = vmax.f32 %v506, 0.0
      %v621 = vmax.f32 %v507, 0.0
      %v622 = vmax.f32 %v508, 0.0
      %v623 = vmax.f32 %v509, 0.0
      %v624 = vmax.f32 %v510, 0.0
      %v625 = vmax.f32 %v511, 0.0
      %v626 = vmax.f32 %v512, 0.0
      %v627 = vmax.f32 %v513, 0.0
      %v628 = vmax.f32 %v514, 0.0
      %v629 = vmax.f32 %v515, 0.0
      %v630 = vmax.f32 %v516, 0.0
      %v631 = vmax.f32 %v517, 0.0
      %v632 = vmax.f32 %v518, 0.0
      %v633 = vmax.f32 %v519, 0.0
      %v634 = vmax.f32 %v520, 0.0
      %v635 = vmax.f32 %v521, 0.0
      %v636 = vmax.f32 %v522, 0.0
      %v637 = vmax.f32 %v523, 0.0
      %v638 = vpack.c.bf16 %v525, %v524
      %v639 = vpack.c.bf16 %v527, %v526
      %v640 = vpack.c.bf16 %v529, %v528
      %v641 = vpack.c.bf16 %v531, %v530
      %v642 = vpack.c.bf16 %v533, %v532
      %v643 = vpack.c.bf16 %v535, %v534
      %v644 = vpack.c.bf16 %v537, %v536
      %v645 = vpack.c.bf16 %v539, %v538
      %v646 = vpack.c.bf16 %v541, %v540
      %v647 = vpack.c.bf16 %v543, %v542
      %v648 = vpack.c.bf16 %v545, %v544
      %v649 = vpack.c.bf16 %v547, %v546
      %v650 = vpack.c.bf16 %v549, %v548
      %v651 = vpack.c.bf16 %v551, %v550
      %v652 = vpack.c.bf16 %v553, %v552
      %v653 = vpack.c.bf16 %v555, %v554
      %v654 = vpack.c.bf16 %v557, %v556
      %v655 = vpack.c.bf16 %v559, %v558
      %v656 = vpack.c.bf16 %v561, %v560
      %v657 = vpack.c.bf16 %v563, %v562
      %v658 = vpack.c.bf16 %v565, %v564
      %v659 = vpack.c.bf16 %v567, %v566
      %v660 = vpack.c.bf16 %v569, %v568
      %v661 = vpack.c.bf16 %v571, %v570
      %v662 = vpack.c.bf16 %v573, %v572
      %v663 = vpack.c.bf16 %v575, %v574
      %v664 = vpack.c.bf16 %v577, %v576
      %v665 = vpack.c.bf16 %v579, %v578
      %v666 = vpack.c.bf16 %v581, %v580
      %v667 = vpack.c.bf16 %v583, %v582
      %v668 = vpack.c.bf16 %v585, %v584
      %v669 = vpack.c.bf16 %v587, %v586
      %v670 = vpack.c.bf16 %v589, %v588
      %v671 = vpack.c.bf16 %v591, %v590
      %v672 = vpack.c.bf16 %v593, %v592
      %v673 = vpack.c.bf16 %v595, %v594
      %v674 = vpack.c.bf16 %v597, %v596
      %v675 = vpack.c.bf16 %v599, %v598
      %v676 = vpack.c.bf16 %v601, %v600
      %v677 = vpack.c.bf16 %v603, %v602
      %v678 = vpack.c.bf16 %v605, %v604
      %v679 = vpack.c.bf16 %v607, %v606
      %v680 = vpack.c.bf16 %v609, %v608
      %v681 = vpack.c.bf16 %v611, %v610
      %v682 = vpack.c.bf16 %v613, %v612
      %v683 = vpack.c.bf16 %v615, %v614
      %v684 = vpack.c.bf16 %v617, %v616
      %v685 = vpack.c.bf16 %v619, %v618
      %v686 = vpack.c.bf16 %v621, %v620
      %v687 = vpack.c.bf16 %v623, %v622
      %v688 = vpack.c.bf16 %v625, %v624
      %v689 = vpack.c.bf16 %v627, %v626
      %v690 = vpack.c.bf16 %v629, %v628
      %v691 = vpack.c.bf16 %v631, %v630
      %v692 = vpack.c.bf16 %v633, %v632
      %v693 = vpack.c.bf16 %v635, %v634
      %v694 = vpack.c.bf16 %v637, %v636
      %v695 = vld [vmem:[%s2] sm:$0xf]
      %vm696 = vcmask 64512
      %v698 = vsel %vm696, %v638, 0
      %v701 = vsel %vm696, %v639, 0
      %v704 = vsel %vm696, %v640, 0
      %v707 = vsel %vm696, %v641, 0
      %v710 = vsel %vm696, %v642, 0
      %v713 = vsel %vm696, %v643, 0
      %v716 = vsel %vm696, %v644, 0
      %v719 = vsel %vm696, %v645, 0
      %v722 = vsel %vm696, %v646, 0
      %v725 = vsel %vm696, %v647, 0
      %v728 = vsel %vm696, %v648, 0
      %v731 = vsel %vm696, %v649, 0
      %v734 = vsel %vm696, %v650, 0
      %v737 = vsel %vm696, %v651, 0
      %v740 = vsel %vm696, %v652, 0
      %v743 = vsel %vm696, %v653, 0
      %v746 = vsel %vm696, %v654, 0
      %v749 = vsel %vm696, %v655, 0
      %v752 = vsel %vm696, %v656, 0
      %v755 = vsel %vm696, %v657, 0
      %v758 = vsel %vm696, %v658, 0
      %v761 = vsel %vm696, %v659, 0
      %v764 = vsel %vm696, %v660, 0
      %v767 = vsel %vm696, %v661, 0
      %v770 = vsel %vm696, %v662, 0
      %v773 = vsel %vm696, %v663, 0
      %v776 = vsel %vm696, %v664, 0
      %v779 = vsel %vm696, %v665, 0
      %v782 = vsel %vm696, %v666, 0
      %v785 = vsel %vm696, %v667, 0
      %v788 = vsel %vm696, %v668, 0
      %v791 = vsel %vm696, %v669, 0
      %v794 = vsel %vm696, %v670, 0
      %v797 = vsel %vm696, %v671, 0
      %v800 = vsel %vm696, %v672, 0
      %v803 = vsel %vm696, %v673, 0
      %v806 = vsel %vm696, %v674, 0
      %v809 = vsel %vm696, %v675, 0
      %v812 = vsel %vm696, %v676, 0
      %v815 = vsel %vm696, %v677, 0
      %v818 = vsel %vm696, %v678, 0
      %v821 = vsel %vm696, %v679, 0
      %v824 = vsel %vm696, %v680, 0
      %v827 = vsel %vm696, %v681, 0
      %v830 = vsel %vm696, %v682, 0
      %v833 = vsel %vm696, %v683, 0
      %v836 = vsel %vm696, %v684, 0
      %v839 = vsel %vm696, %v685, 0
      %v842 = vsel %vm696, %v686, 0
      %v845 = vsel %vm696, %v687, 0
      %v848 = vsel %vm696, %v688, 0
      %v851 = vsel %vm696, %v689, 0
      %v854 = vsel %vm696, %v690, 0
      %v857 = vsel %vm696, %v691, 0
      %v860 = vsel %vm696, %v692, 0
      %v863 = vsel %vm696, %v693, 0
      %v866 = vsel %vm696, %v694, 0
      %vm868 = vcmask 1043456
      %v870 = vsel %vm868, %v695, 0
      %872 = vmatprep.subr.bf16.mxu0 0
      %873 = vmatpush1.bf16.msra.mxu0 %v870
      %874 = vmatprep.subr.bf16.mxu0 0
      %875 = vmatpush1.bf16.msra.mxu0 0
      %876 = vmatprep.subr.bf16.mxu0 0
      %877 = vmatpush1.bf16.msra.mxu0 0
      %878 = vmatprep.subr.bf16.mxu0 0
      %879 = vmatpush1.bf16.msra.mxu0 0
      %880 = vmatprep.subr.bf16.mxu0 0
      %881 = vmatpush1.bf16.msra.mxu0 0
      %882 = vmatprep.subr.bf16.mxu0 0
      %883 = vmatpush1.bf16.msra.mxu0 0
      %884 = vmatprep.subr.bf16.mxu0 0
      %885 = vmatpush1.bf16.msra.mxu0 0
      %886 = vmatprep.subr.bf16.mxu0 0
      %887 = vmatpush1.bf16.msra.mxu0 0
      %888 = vmatprep.subr.bf16.mxu0 0
      %889 = vmatpush1.bf16.msra.mxu0 0
      %890 = vmatprep.subr.bf16.mxu0 0
      %891 = vmatpush1.bf16.msra.mxu0 0
      %892 = vmatprep.subr.bf16.mxu0 0
      %893 = vmatpush1.bf16.msra.mxu0 0
      %894 = vmatprep.subr.bf16.mxu0 0
      %895 = vmatpush1.bf16.msra.mxu0 0
      %896 = vmatprep.subr.bf16.mxu0 0
      %897 = vmatpush1.bf16.msra.mxu0 0
      %898 = vmatprep.subr.bf16.mxu0 0
      %899 = vmatpush1.bf16.msra.mxu0 0
      %900 = vmatprep.subr.bf16.mxu0 0
      %901 = vmatpush1.bf16.msra.mxu0 0
      %902 = vmatprep.subr.bf16.mxu0 0
      %903 = vmatpush1.bf16.msra.mxu0 0
      %904 = vmatprep.mubr.bf16.mxu0 0
      %905 = vmatmul.mubr.bf16.gmra.mrb[0].mxu0 %v698
      %v906 = vpop.f32.mrb[0].mxu0
      %v907 = vadd.f32 0.0, %v906
      %v908 = vpop.f32.mrb[0].mxu0
      %v909 = vpop.f32.mrb[0].mxu0
      %v910 = vadd.f32 0.0, %v909
      %v911 = vpop.f32.mrb[0].mxu0
      %912 = vmatprep.mubr.bf16.mxu0 0
      %913 = vmatmul.mubr.bf16.gmra.mrb[0].mxu0 %v701
      %v914 = vpop.f32.mrb[0].mxu0
      %v915 = vadd.f32 0.0, %v914
      %v916 = vpop.f32.mrb[0].mxu0
      %v917 = vpop.f32.mrb[0].mxu0
      %v918 = vadd.f32 0.0, %v917
      %v919 = vpop.f32.mrb[0].mxu0
      %920 = vmatprep.mubr.bf16.mxu0 0
      %921 = vmatmul.mubr.bf16.gmra.mrb[0].mxu0 %v704
      %v922 = vpop.f32.mrb[0].mxu0
      %v923 = vadd.f32 0.0, %v922
      %v924 = vpop.f32.mrb[0].mxu0
      %v925 = vpop.f32.mrb[0].mxu0
      %v926 = vadd.f32 0.0, %v925
      %v927 = vpop.f32.mrb[0].mxu0
      %928 = vmatprep.mubr.bf16.mxu0 0
      %929 = vmatmul.mubr.bf16.gmra.mrb[0].mxu0 %v707
      %v930 = vpop.f32.mrb[0].mxu0
      %v931 = vadd.f32 0.0, %v930
      %v932 = vpop.f32.mrb[0].mxu0
      %v933 = vpop.f32.mrb[0].mxu0
      %v934 = vadd.f32 0.0, %v933
      %v935 = vpop.f32.mrb[0].mxu0
      %936 = vmatprep.mubr.bf16.mxu0 0
      %937 = vmatmul.mubr.bf16.gmra.mrb[0].mxu0 %v710
      %v938 = vpop.f32.mrb[0].mxu0
      %v939 = vadd.f32 0.0, %v938
      %v940 = vpop.f32.mrb[0].mxu0
      %v941 = vpop.f32.mrb[0].mxu0
      %v942 = vadd.f32 0.0, %v941
      %v943 = vpop.f32.mrb[0].mxu0
      %944 = vmatprep.mubr.bf16.mxu0 0
      %945 = vmatmul.mubr.bf16.gmra.mrb[0].mxu0 %v713
      %v946 = vpop.f32.mrb[0].mxu0
      %v947 = vadd.f32 0.0, %v946
      %v948 = vpop.f32.mrb[0].mxu0
      %v949 = vpop.f32.mrb[0].mxu0
      %v950 = vadd.f32 0.0, %v949
      %v951 = vpop.f32.mrb[0].mxu0
      %952 = vmatprep.mubr.bf16.mxu0 0
      %953 = vmatmul.mubr.bf16.gmra.mrb[0].mxu0 %v716
      %v954 = vpop.f32.mrb[0].mxu0
      %v955 = vadd.f32 0.0, %v954
      %v956 = vpop.f32.mrb[0].mxu0
      %v957 = vpop.f32.mrb[0].mxu0
      %v958 = vadd.f32 0.0, %v957
      %v959 = vpop.f32.mrb[0].mxu0
      %960 = vmatprep.mubr.bf16.mxu0 0
      %961 = vmatmul.mubr.bf16.gmra.mrb[0].mxu0 %v719
      %v962 = vpop.f32.mrb[0].mxu0
      %v963 = vadd.f32 0.0, %v962
      %v964 = vpop.f32.mrb[0].mxu0
      %v965 = vpop.f32.mrb[0].mxu0
      %v966 = vadd.f32 0.0, %v965
      %v967 = vpop.f32.mrb[0].mxu0
      %968 = vmatprep.mubr.bf16.mxu0 0
      %969 = vmatmul.mubr.bf16.gmra.mrb[0].mxu0 %v722
      %v970 = vpop.f32.mrb[0].mxu0
      %v971 = vadd.f32 0.0, %v970
      %v972 = vpop.f32.mrb[0].mxu0
      %v973 = vpop.f32.mrb[0].mxu0
      %v974 = vadd.f32 0.0, %v973
      %v975 = vpop.f32.mrb[0].mxu0
      %976 = vmatprep.mubr.bf16.mxu0 0
      %977 = vmatmul.mubr.bf16.gmra.mrb[0].mxu0 %v725
      %v978 = vpop.f32.mrb[0].mxu0
      %v979 = vadd.f32 0.0, %v978
      %v980 = vpop.f32.mrb[0].mxu0
      %v981 = vpop.f32.mrb[0].mxu0
      %v982 = vadd.f32 0.0, %v981
      %v983 = vpop.f32.mrb[0].mxu0
      %984 = vmatprep.mubr.bf16.mxu0 0
      %985 = vmatmul.mubr.bf16.gmra.mrb[0].mxu0 %v728
      %v986 = vpop.f32.mrb[0].mxu0
      %v987 = vadd.f32 0.0, %v986
      %v988 = vpop.f32.mrb[0].mxu0
      %v989 = vpop.f32.mrb[0].mxu0
      %v990 = vadd.f32 0.0, %v989
      %v991 = vpop.f32.mrb[0].mxu0
      %992 = vmatprep.mubr.bf16.mxu0 0
      %993 = vmatmul.mubr.bf16.gmra.mrb[0].mxu0 %v731
      %v994 = vpop.f32.mrb[0].mxu0
      %v995 = vadd.f32 0.0, %v994
      %v996 = vpop.f32.mrb[0].mxu0
      %v997 = vpop.f32.mrb[0].mxu0
      %v998 = vadd.f32 0.0, %v997
      %v999 = vpop.f32.mrb[0].mxu0
      %1000 = vmatprep.mubr.bf16.mxu0 0
      %1001 = vmatmul.mubr.bf16.gmra.mrb[0].mxu0 %v734
      %v1002 = vpop.f32.mrb[0].mxu0
      %v1003 = vadd.f32 0.0, %v1002
      %v1004 = vpop.f32.mrb[0].mxu0
      %v1005 = vpop.f32.mrb[0].mxu0
      %v1006 = vadd.f32 0.0, %v1005
      %v1007 = vpop.f32.mrb[0].mxu0
      %1008 = vmatprep.mubr.bf16.mxu0 0
      %1009 = vmatmul.mubr.bf16.gmra.mrb[0].mxu0 %v737
      %v1010 = vpop.f32.mrb[0].mxu0
      %v1011 = vadd.f32 0.0, %v1010
      %v1012 = vpop.f32.mrb[0].mxu0
      %v1013 = vpop.f32.mrb[0].mxu0
      %v1014 = vadd.f32 0.0, %v1013
      %v1015 = vpop.f32.mrb[0].mxu0
      %1016 = vmatprep.mubr.bf16.mxu0 0
      %1017 = vmatmul.mubr.bf16.gmra.mrb[0].mxu0 %v740
      %v1018 = vpop.f32.mrb[0].mxu0
      %v1019 = vadd.f32 0.0, %v1018
      %v1020 = vpop.f32.mrb[0].mxu0
      %v1021 = vpop.f32.mrb[0].mxu0
      %v1022 = vadd.f32 0.0, %v1021
      %v1023 = vpop.f32.mrb[0].mxu0
      %1024 = vmatprep.mubr.bf16.mxu0 0
      %1025 = vmatmul.mubr.bf16.gmra.mrb[0].mxu0 %v743
      %v1026 = vpop.f32.mrb[0].mxu0
      %v1027 = vadd.f32 0.0, %v1026
      %v1028 = vpop.f32.mrb[0].mxu0
      %v1029 = vpop.f32.mrb[0].mxu0
      %v1030 = vadd.f32 0.0, %v1029
      %v1031 = vpop.f32.mrb[0].mxu0
      %1032 = vmatprep.mubr.bf16.mxu0 0
      %1033 = vmatmul.mubr.bf16.gmra.mrb[0].mxu0 %v746
      %v1034 = vpop.f32.mrb[0].mxu0
      %v1035 = vadd.f32 0.0, %v1034
      %v1036 = vpop.f32.mrb[0].mxu0
      %v1037 = vpop.f32.mrb[0].mxu0
      %v1038 = vadd.f32 0.0, %v1037
      %v1039 = vpop.f32.mrb[0].mxu0
      %1040 = vmatprep.mubr.bf16.mxu0 0
      %1041 = vmatmul.mubr.bf16.gmra.mrb[0].mxu0 %v749
      %v1042 = vpop.f32.mrb[0].mxu0
      %v1043 = vadd.f32 0.0, %v1042
      %v1044 = vpop.f32.mrb[0].mxu0
      %v1045 = vpop.f32.mrb[0].mxu0
      %v1046 = vadd.f32 0.0, %v1045
      %v1047 = vpop.f32.mrb[0].mxu0
      %1048 = vmatprep.mubr.bf16.mxu0 0
      %1049 = vmatmul.mubr.bf16.gmra.mrb[0].mxu0 %v752
      %v1050 = vpop.f32.mrb[0].mxu0
      %v1051 = vadd.f32 0.0, %v1050
      %v1052 = vpop.f32.mrb[0].mxu0
      %v1053 = vpop.f32.mrb[0].mxu0
      %v1054 = vadd.f32 0.0, %v1053
      %v1055 = vpop.f32.mrb[0].mxu0
      %1056 = vmatprep.mubr.bf16.mxu0 0
      %1057 = vmatmul.mubr.bf16.gmra.mrb[0].mxu0 %v755
      %v1058 = vpop.f32.mrb[0].mxu0
      %v1059 = vadd.f32 0.0, %v1058
      %v1060 = vpop.f32.mrb[0].mxu0
      %v1061 = vpop.f32.mrb[0].mxu0
      %v1062 = vadd.f32 0.0, %v1061
      %v1063 = vpop.f32.mrb[0].mxu0
      %1064 = vmatprep.mubr.bf16.mxu0 0
      %1065 = vmatmul.mubr.bf16.gmra.mrb[0].mxu0 %v758
      %v1066 = vpop.f32.mrb[0].mxu0
      %v1067 = vadd.f32 0.0, %v1066
      %v1068 = vpop.f32.mrb[0].mxu0
      %v1069 = vpop.f32.mrb[0].mxu0
      %v1070 = vadd.f32 0.0, %v1069
      %v1071 = vpop.f32.mrb[0].mxu0
      %1072 = vmatprep.mubr.bf16.mxu0 0
      %1073 = vmatmul.mubr.bf16.gmra.mrb[0].mxu0 %v761
      %v1074 = vpop.f32.mrb[0].mxu0
      %v1075 = vadd.f32 0.0, %v1074
      %v1076 = vpop.f32.mrb[0].mxu0
      %v1077 = vpop.f32.mrb[0].mxu0
      %v1078 = vadd.f32 0.0, %v1077
      %v1079 = vpop.f32.mrb[0].mxu0
      %1080 = vmatprep.mubr.bf16.mxu0 0
      %1081 = vmatmul.mubr.bf16.gmra.mrb[0].mxu0 %v764
      %v1082 = vpop.f32.mrb[0].mxu0
      %v1083 = vadd.f32 0.0, %v1082
      %v1084 = vpop.f32.mrb[0].mxu0
      %v1085 = vpop.f32.mrb[0].mxu0
      %v1086 = vadd.f32 0.0, %v1085
      %v1087 = vpop.f32.mrb[0].mxu0
      %1088 = vmatprep.mubr.bf16.mxu0 0
      %1089 = vmatmul.mubr.bf16.gmra.mrb[0].mxu0 %v767
      %v1090 = vpop.f32.mrb[0].mxu0
      %v1091 = vadd.f32 0.0, %v1090
      %v1092 = vpop.f32.mrb[0].mxu0
      %v1093 = vpop.f32.mrb[0].mxu0
      %v1094 = vadd.f32 0.0, %v1093
      %v1095 = vpop.f32.mrb[0].mxu0
      %1096 = vmatprep.mubr.bf16.mxu0 0
      %1097 = vmatmul.mubr.bf16.gmra.mrb[0].mxu0 %v770
      %v1098 = vpop.f32.mrb[0].mxu0
      %v1099 = vadd.f32 0.0, %v1098
      %v1100 = vpop.f32.mrb[0].mxu0
      %v1101 = vpop.f32.mrb[0].mxu0
      %v1102 = vadd.f32 0.0, %v1101
      %v1103 = vpop.f32.mrb[0].mxu0
      %1104 = vmatprep.mubr.bf16.mxu0 0
      %1105 = vmatmul.mubr.bf16.gmra.mrb[0].mxu0 %v773
      %v1106 = vpop.f32.mrb[0].mxu0
      %v1107 = vadd.f32 0.0, %v1106
      %v1108 = vpop.f32.mrb[0].mxu0
      %v1109 = vpop.f32.mrb[0].mxu0
      %v1110 = vadd.f32 0.0, %v1109
      %v1111 = vpop.f32.mrb[0].mxu0
      %1112 = vmatprep.mubr.bf16.mxu0 0
      %1113 = vmatmul.mubr.bf16.gmra.mrb[0].mxu0 %v776
      %v1114 = vpop.f32.mrb[0].mxu0
      %v1115 = vadd.f32 0.0, %v1114
      %v1116 = vpop.f32.mrb[0].mxu0
      %v1117 = vpop.f32.mrb[0].mxu0
      %v1118 = vadd.f32 0.0, %v1117
      %v1119 = vpop.f32.mrb[0].mxu0
      %1120 = vmatprep.mubr.bf16.mxu0 0
      %1121 = vmatmul.mubr.bf16.gmra.mrb[0].mxu0 %v779
      %v1122 = vpop.f32.mrb[0].mxu0
      %v1123 = vadd.f32 0.0, %v1122
      %v1124 = vpop.f32.mrb[0].mxu0
      %v1125 = vpop.f32.mrb[0].mxu0
      %v1126 = vadd.f32 0.0, %v1125
      %v1127 = vpop.f32.mrb[0].mxu0
      %1128 = vmatprep.mubr.bf16.mxu0 0
      %1129 = vmatmul.mubr.bf16.gmra.mrb[0].mxu0 %v782
      %v1130 = vpop.f32.mrb[0].mxu0
      %v1131 = vadd.f32 0.0, %v1130
      %v1132 = vpop.f32.mrb[0].mxu0
      %v1133 = vpop.f32.mrb[0].mxu0
      %v1134 = vadd.f32 0.0, %v1133
      %v1135 = vpop.f32.mrb[0].mxu0
      %1136 = vmatprep.mubr.bf16.mxu0 0
      %1137 = vmatmul.mubr.bf16.gmra.mrb[0].mxu0 %v785
      %v1138 = vpop.f32.mrb[0].mxu0
      %v1139 = vadd.f32 0.0, %v1138
      %v1140 = vpop.f32.mrb[0].mxu0
      %v1141 = vpop.f32.mrb[0].mxu0
      %v1142 = vadd.f32 0.0, %v1141
      %v1143 = vpop.f32.mrb[0].mxu0
      %1144 = vmatprep.mubr.bf16.mxu0 0
      %1145 = vmatmul.mubr.bf16.gmra.mrb[0].mxu0 %v788
      %v1146 = vpop.f32.mrb[0].mxu0
      %v1147 = vadd.f32 0.0, %v1146
      %v1148 = vpop.f32.mrb[0].mxu0
      %v1149 = vpop.f32.mrb[0].mxu0
      %v1150 = vadd.f32 0.0, %v1149
      %v1151 = vpop.f32.mrb[0].mxu0
      %1152 = vmatprep.mubr.bf16.mxu0 0
      %1153 = vmatmul.mubr.bf16.gmra.mrb[0].mxu0 %v791
      %v1154 = vpop.f32.mrb[0].mxu0
      %v1155 = vadd.f32 0.0, %v1154
      %v1156 = vpop.f32.mrb[0].mxu0
      %v1157 = vpop.f32.mrb[0].mxu0
      %v1158 = vadd.f32 0.0, %v1157
      %v1159 = vpop.f32.mrb[0].mxu0
      %1160 = vmatprep.mubr.bf16.mxu0 0
      %1161 = vmatmul.mubr.bf16.gmra.mrb[0].mxu0 %v794
      %v1162 = vpop.f32.mrb[0].mxu0
      %v1163 = vadd.f32 0.0, %v1162
      %v1164 = vpop.f32.mrb[0].mxu0
      %v1165 = vpop.f32.mrb[0].mxu0
      %v1166 = vadd.f32 0.0, %v1165
      %v1167 = vpop.f32.mrb[0].mxu0
      %1168 = vmatprep.mubr.bf16.mxu0 0
      %1169 = vmatmul.mubr.bf16.gmra.mrb[0].mxu0 %v797
      %v1170 = vpop.f32.mrb[0].mxu0
      %v1171 = vadd.f32 0.0, %v1170
      %v1172 = vpop.f32.mrb[0].mxu0
      %v1173 = vpop.f32.mrb[0].mxu0
      %v1174 = vadd.f32 0.0, %v1173
      %v1175 = vpop.f32.mrb[0].mxu0
      %1176 = vmatprep.mubr.bf16.mxu0 0
      %1177 = vmatmul.mubr.bf16.gmra.mrb[0].mxu0 %v800
      %v1178 = vpop.f32.mrb[0].mxu0
      %v1179 = vadd.f32 0.0, %v1178
      %v1180 = vpop.f32.mrb[0].mxu0
      %v1181 = vpop.f32.mrb[0].mxu0
      %v1182 = vadd.f32 0.0, %v1181
      %v1183 = vpop.f32.mrb[0].mxu0
      %1184 = vmatprep.mubr.bf16.mxu0 0
      %1185 = vmatmul.mubr.bf16.gmra.mrb[0].mxu0 %v803
      %v1186 = vpop.f32.mrb[0].mxu0
      %v1187 = vadd.f32 0.0, %v1186
      %v1188 = vpop.f32.mrb[0].mxu0
      %v1189 = vpop.f32.mrb[0].mxu0
      %v1190 = vadd.f32 0.0, %v1189
      %v1191 = vpop.f32.mrb[0].mxu0
      %1192 = vmatprep.mubr.bf16.mxu0 0
      %1193 = vmatmul.mubr.bf16.gmra.mrb[0].mxu0 %v806
      %v1194 = vpop.f32.mrb[0].mxu0
      %v1195 = vadd.f32 0.0, %v1194
      %v1196 = vpop.f32.mrb[0].mxu0
      %v1197 = vpop.f32.mrb[0].mxu0
      %v1198 = vadd.f32 0.0, %v1197
      %v1199 = vpop.f32.mrb[0].mxu0
      %1200 = vmatprep.mubr.bf16.mxu0 0
      %1201 = vmatmul.mubr.bf16.gmra.mrb[0].mxu0 %v809
      %v1202 = vpop.f32.mrb[0].mxu0
      %v1203 = vadd.f32 0.0, %v1202
      %v1204 = vpop.f32.mrb[0].mxu0
      %v1205 = vpop.f32.mrb[0].mxu0
      %v1206 = vadd.f32 0.0, %v1205
      %v1207 = vpop.f32.mrb[0].mxu0
      %1208 = vmatprep.mubr.bf16.mxu0 0
      %1209 = vmatmul.mubr.bf16.gmra.mrb[0].mxu0 %v812
      %v1210 = vpop.f32.mrb[0].mxu0
      %v1211 = vadd.f32 0.0, %v1210
      %v1212 = vpop.f32.mrb[0].mxu0
      %v1213 = vpop.f32.mrb[0].mxu0
      %v1214 = vadd.f32 0.0, %v1213
      %v1215 = vpop.f32.mrb[0].mxu0
      %1216 = vmatprep.mubr.bf16.mxu0 0
      %1217 = vmatmul.mubr.bf16.gmra.mrb[0].mxu0 %v815
      %v1218 = vpop.f32.mrb[0].mxu0
      %v1219 = vadd.f32 0.0, %v1218
      %v1220 = vpop.f32.mrb[0].mxu0
      %v1221 = vpop.f32.mrb[0].mxu0
      %v1222 = vadd.f32 0.0, %v1221
      %v1223 = vpop.f32.mrb[0].mxu0
      %1224 = vmatprep.mubr.bf16.mxu0 0
      %1225 = vmatmul.mubr.bf16.gmra.mrb[0].mxu0 %v818
      %v1226 = vpop.f32.mrb[0].mxu0
      %v1227 = vadd.f32 0.0, %v1226
      %v1228 = vpop.f32.mrb[0].mxu0
      %v1229 = vpop.f32.mrb[0].mxu0
      %v1230 = vadd.f32 0.0, %v1229
      %v1231 = vpop.f32.mrb[0].mxu0
      %1232 = vmatprep.mubr.bf16.mxu0 0
      %1233 = vmatmul.mubr.bf16.gmra.mrb[0].mxu0 %v821
      %v1234 = vpop.f32.mrb[0].mxu0
      %v1235 = vadd.f32 0.0, %v1234
      %v1236 = vpop.f32.mrb[0].mxu0
      %v1237 = vpop.f32.mrb[0].mxu0
      %v1238 = vadd.f32 0.0, %v1237
      %v1239 = vpop.f32.mrb[0].mxu0
      %1240 = vmatprep.mubr.bf16.mxu0 0
      %1241 = vmatmul.mubr.bf16.gmra.mrb[0].mxu0 %v824
      %v1242 = vpop.f32.mrb[0].mxu0
      %v1243 = vadd.f32 0.0, %v1242
      %v1244 = vpop.f32.mrb[0].mxu0
      %v1245 = vpop.f32.mrb[0].mxu0
      %v1246 = vadd.f32 0.0, %v1245
      %v1247 = vpop.f32.mrb[0].mxu0
      %1248 = vmatprep.mubr.bf16.mxu0 0
      %1249 = vmatmul.mubr.bf16.gmra.mrb[0].mxu0 %v827
      %v1250 = vpop.f32.mrb[0].mxu0
      %v1251 = vadd.f32 0.0, %v1250
      %v1252 = vpop.f32.mrb[0].mxu0
      %v1253 = vpop.f32.mrb[0].mxu0
      %v1254 = vadd.f32 0.0, %v1253
      %v1255 = vpop.f32.mrb[0].mxu0
      %1256 = vmatprep.mubr.bf16.mxu0 0
      %1257 = vmatmul.mubr.bf16.gmra.mrb[0].mxu0 %v830
      %v1258 = vpop.f32.mrb[0].mxu0
      %v1259 = vadd.f32 0.0, %v1258
      %v1260 = vpop.f32.mrb[0].mxu0
      %v1261 = vpop.f32.mrb[0].mxu0
      %v1262 = vadd.f32 0.0, %v1261
      %v1263 = vpop.f32.mrb[0].mxu0
      %1264 = vmatprep.mubr.bf16.mxu0 0
      %1265 = vmatmul.mubr.bf16.gmra.mrb[0].mxu0 %v833
      %v1266 = vpop.f32.mrb[0].mxu0
      %v1267 = vadd.f32 0.0, %v1266
      %v1268 = vpop.f32.mrb[0].mxu0
      %v1269 = vpop.f32.mrb[0].mxu0
      %v1270 = vadd.f32 0.0, %v1269
      %v1271 = vpop.f32.mrb[0].mxu0
      %1272 = vmatprep.mubr.bf16.mxu0 0
      %1273 = vmatmul.mubr.bf16.gmra.mrb[0].mxu0 %v836
      %v1274 = vpop.f32.mrb[0].mxu0
      %v1275 = vadd.f32 0.0, %v1274
      %v1276 = vpop.f32.mrb[0].mxu0
      %v1277 = vpop.f32.mrb[0].mxu0
      %v1278 = vadd.f32 0.0, %v1277
      %v1279 = vpop.f32.mrb[0].mxu0
      %1280 = vmatprep.mubr.bf16.mxu0 0
      %1281 = vmatmul.mubr.bf16.gmra.mrb[0].mxu0 %v839
      %v1282 = vpop.f32.mrb[0].mxu0
      %v1283 = vadd.f32 0.0, %v1282
      %v1284 = vpop.f32.mrb[0].mxu0
      %v1285 = vpop.f32.mrb[0].mxu0
      %v1286 = vadd.f32 0.0, %v1285
      %v1287 = vpop.f32.mrb[0].mxu0
      %1288 = vmatprep.mubr.bf16.mxu0 0
      %1289 = vmatmul.mubr.bf16.gmra.mrb[0].mxu0 %v842
      %v1290 = vpop.f32.mrb[0].mxu0
      %v1291 = vadd.f32 0.0, %v1290
      %v1292 = vpop.f32.mrb[0].mxu0
      %v1293 = vpop.f32.mrb[0].mxu0
      %v1294 = vadd.f32 0.0, %v1293
      %v1295 = vpop.f32.mrb[0].mxu0
      %1296 = vmatprep.mubr.bf16.mxu0 0
      %1297 = vmatmul.mubr.bf16.gmra.mrb[0].mxu0 %v845
      %v1298 = vpop.f32.mrb[0].mxu0
      %v1299 = vadd.f32 0.0, %v1298
      %v1300 = vpop.f32.mrb[0].mxu0
      %v1301 = vpop.f32.mrb[0].mxu0
      %v1302 = vadd.f32 0.0, %v1301
      %v1303 = vpop.f32.mrb[0].mxu0
      %1304 = vmatprep.mubr.bf16.mxu0 0
      %1305 = vmatmul.mubr.bf16.gmra.mrb[0].mxu0 %v848
      %v1306 = vpop.f32.mrb[0].mxu0
      %v1307 = vadd.f32 0.0, %v1306
      %v1308 = vpop.f32.mrb[0].mxu0
      %v1309 = vpop.f32.mrb[0].mxu0
      %v1310 = vadd.f32 0.0, %v1309
      %v1311 = vpop.f32.mrb[0].mxu0
      %1312 = vmatprep.mubr.bf16.mxu0 0
      %1313 = vmatmul.mubr.bf16.gmra.mrb[0].mxu0 %v851
      %v1314 = vpop.f32.mrb[0].mxu0
      %v1315 = vadd.f32 0.0, %v1314
      %v1316 = vpop.f32.mrb[0].mxu0
      %v1317 = vpop.f32.mrb[0].mxu0
      %v1318 = vadd.f32 0.0, %v1317
      %v1319 = vpop.f32.mrb[0].mxu0
      %1320 = vmatprep.mubr.bf16.mxu0 0
      %1321 = vmatmul.mubr.bf16.gmra.mrb[0].mxu0 %v854
      %v1322 = vpop.f32.mrb[0].mxu0
      %v1323 = vadd.f32 0.0, %v1322
      %v1324 = vpop.f32.mrb[0].mxu0
      %v1325 = vpop.f32.mrb[0].mxu0
      %v1326 = vadd.f32 0.0, %v1325
      %v1327 = vpop.f32.mrb[0].mxu0
      %1328 = vmatprep.mubr.bf16.mxu0 0
      %1329 = vmatmul.mubr.bf16.gmra.mrb[0].mxu0 %v857
      %v1330 = vpop.f32.mrb[0].mxu0
      %v1331 = vadd.f32 0.0, %v1330
      %v1332 = vpop.f32.mrb[0].mxu0
      %v1333 = vpop.f32.mrb[0].mxu0
      %v1334 = vadd.f32 0.0, %v1333
      %v1335 = vpop.f32.mrb[0].mxu0
      %1336 = vmatprep.mubr.bf16.mxu0 0
      %1337 = vmatmul.mubr.bf16.gmra.mrb[0].mxu0 %v860
      %v1338 = vpop.f32.mrb[0].mxu0
      %v1339 = vadd.f32 0.0, %v1338
      %v1340 = vpop.f32.mrb[0].mxu0
      %v1341 = vpop.f32.mrb[0].mxu0
      %v1342 = vadd.f32 0.0, %v1341
      %v1343 = vpop.f32.mrb[0].mxu0
      %1344 = vmatprep.mubr.bf16.mxu0 0
      %1345 = vmatmul.mubr.bf16.gmra.mrb[0].mxu0 %v863
      %v1346 = vpop.f32.mrb[0].mxu0
      %v1347 = vadd.f32 0.0, %v1346
      %v1348 = vpop.f32.mrb[0].mxu0
      %v1349 = vpop.f32.mrb[0].mxu0
      %v1350 = vadd.f32 0.0, %v1349
      %v1351 = vpop.f32.mrb[0].mxu0
      %1352 = vmatprep.mubr.bf16.mxu0 0
      %1353 = vmatmul.mubr.bf16.gmra.mrb[0].mxu0 %v866
      %v1354 = vpop.f32.mrb[0].mxu0
      %v1355 = vadd.f32 0.0, %v1354
      %v1356 = vpop.f32.mrb[0].mxu0
      %v1357 = vpop.f32.mrb[0].mxu0
      %v1358 = vadd.f32 0.0, %v1357
      %v1359 = vpop.f32.mrb[0].mxu0
      %1360 = vdwg.mxu0
      %1361 = vst [vmem:[%s172] sm:$0xff] %v907
      %1362 = vst [vmem:[%s172 + $0x8] sm:$0xff] %v910
      %1363 = vst [vmem:[%s172 + $0x10] sm:$0xff] %v915
      %1364 = vst [vmem:[%s172 + $0x18] sm:$0xff] %v918
      %1365 = vst [vmem:[%s172 + $0x20] sm:$0xff] %v923
      %1366 = vst [vmem:[%s172 + $0x28] sm:$0xff] %v926
      %1367 = vst [vmem:[%s172 + $0x30] sm:$0xff] %v931
      %1368 = vst [vmem:[%s172 + $0x38] sm:$0xff] %v934
      %1369 = vst [vmem:[%s172 + $0x40] sm:$0xff] %v939
      %1370 = vst [vmem:[%s172 + $0x48] sm:$0xff] %v942
      %1371 = vst [vmem:[%s172 + $0x50] sm:$0xff] %v947
      %1372 = vst [vmem:[%s172 + $0x58] sm:$0xff] %v950
      %1373 = vst [vmem:[%s172 + $0x60] sm:$0xff] %v955
      %1374 = vst [vmem:[%s172 + $0x68] sm:$0xff] %v958
      %1375 = vst [vmem:[%s172 + $0x70] sm:$0xff] %v963
      %1376 = vst [vmem:[%s172 + $0x78] sm:$0xff] %v966
      %1377 = vst [vmem:[%s172 + $0x80] sm:$0xff] %v971
      %1378 = vst [vmem:[%s172 + $0x88] sm:$0xff] %v974
      %1379 = vst [vmem:[%s172 + $0x90] sm:$0xff] %v979
      %1380 = vst [vmem:[%s172 + $0x98] sm:$0xff] %v982
      %1381 = vst [vmem:[%s172 + $0xa0] sm:$0xff] %v987
      %1382 = vst [vmem:[%s172 + $0xa8] sm:$0xff] %v990
      %1383 = vst [vmem:[%s172 + $0xb0] sm:$0xff] %v995
      %1384 = vst [vmem:[%s172 + $0xb8] sm:$0xff] %v998
      %1385 = vst [vmem:[%s172 + $0xc0] sm:$0xff] %v1003
      %1386 = vst [vmem:[%s172 + $0xc8] sm:$0xff] %v1006
      %1387 = vst [vmem:[%s172 + $0xd0] sm:$0xff] %v1011
      %1388 = vst [vmem:[%s172 + $0xd8] sm:$0xff] %v1014
      %1389 = vst [vmem:[%s172 + $0xe0] sm:$0xff] %v1019
      %1390 = vst [vmem:[%s172 + $0xe8] sm:$0xff] %v1022
      %1391 = vst [vmem:[%s172 + $0xf0] sm:$0xff] %v1027
      %1392 = vst [vmem:[%s172 + $0xf8] sm:$0xff] %v1030
      %1393 = vst [vmem:[%s172 + $0x100] sm:$0xff] %v1035
      %1394 = vst [vmem:[%s172 + $0x108] sm:$0xff] %v1038
      %1395 = vst [vmem:[%s172 + $0x110] sm:$0xff] %v1043
      %1396 = vst [vmem:[%s172 + $0x118] sm:$0xff] %v1046
      %1397 = vst [vmem:[%s172 + $0x120] sm:$0xff] %v1051
      %1398 = vst [vmem:[%s172 + $0x128] sm:$0xff] %v1054
      %1399 = vst [vmem:[%s172 + $0x130] sm:$0xff] %v1059
      %1400 = vst [vmem:[%s172 + $0x138] sm:$0xff] %v1062
      %1401 = vst [vmem:[%s172 + $0x140] sm:$0xff] %v1067
      %1402 = vst [vmem:[%s172 + $0x148] sm:$0xff] %v1070
      %1403 = vst [vmem:[%s172 + $0x150] sm:$0xff] %v1075
      %1404 = vst [vmem:[%s172 + $0x158] sm:$0xff] %v1078
      %1405 = vst [vmem:[%s172 + $0x160] sm:$0xff] %v1083
      %1406 = vst [vmem:[%s172 + $0x168] sm:$0xff] %v1086
      %1407 = vst [vmem:[%s172 + $0x170] sm:$0xff] %v1091
      %1408 = vst [vmem:[%s172 + $0x178] sm:$0xff] %v1094
      %1409 = vst [vmem:[%s172 + $0x180] sm:$0xff] %v1099
      %1410 = vst [vmem:[%s172 + $0x188] sm:$0xff] %v1102
      %1411 = vst [vmem:[%s172 + $0x190] sm:$0xff] %v1107
      %1412 = vst [vmem:[%s172 + $0x198] sm:$0xff] %v1110
      %1413 = vst [vmem:[%s172 + $0x1a0] sm:$0xff] %v1115
      %1414 = vst [vmem:[%s172 + $0x1a8] sm:$0xff] %v1118
      %1415 = vst [vmem:[%s172 + $0x1b0] sm:$0xff] %v1123
      %1416 = vst [vmem:[%s172 + $0x1b8] sm:$0xff] %v1126
      %1417 = vst [vmem:[%s172 + $0x1c0] sm:$0xff] %v1131
      %1418 = vst [vmem:[%s172 + $0x1c8] sm:$0xff] %v1134
      %1419 = vst [vmem:[%s172 + $0x1d0] sm:$0xff] %v1139
      %1420 = vst [vmem:[%s172 + $0x1d8] sm:$0xff] %v1142
      %1421 = vst [vmem:[%s172 + $0x1e0] sm:$0xff] %v1147
      %1422 = vst [vmem:[%s172 + $0x1e8] sm:$0xff] %v1150
      %1423 = vst [vmem:[%s172 + $0x1f0] sm:$0xff] %v1155
      %1424 = vst [vmem:[%s172 + $0x1f8] sm:$0xff] %v1158
      %1425 = vst [vmem:[%s172 + $0x200] sm:$0xff] %v1163
      %1426 = vst [vmem:[%s172 + $0x208] sm:$0xff] %v1166
      %1427 = vst [vmem:[%s172 + $0x210] sm:$0xff] %v1171
      %1428 = vst [vmem:[%s172 + $0x218] sm:$0xff] %v1174
      %1429 = vst [vmem:[%s172 + $0x220] sm:$0xff] %v1179
      %1430 = vst [vmem:[%s172 + $0x228] sm:$0xff] %v1182
      %1431 = vst [vmem:[%s172 + $0x230] sm:$0xff] %v1187
      %1432 = vst [vmem:[%s172 + $0x238] sm:$0xff] %v1190
      %1433 = vst [vmem:[%s172 + $0x240] sm:$0xff] %v1195
      %1434 = vst [vmem:[%s172 + $0x248] sm:$0xff] %v1198
      %1435 = vst [vmem:[%s172 + $0x250] sm:$0xff] %v1203
      %1436 = vst [vmem:[%s172 + $0x258] sm:$0xff] %v1206
      %1437 = vst [vmem:[%s172 + $0x260] sm:$0xff] %v1211
      %1438 = vst [vmem:[%s172 + $0x268] sm:$0xff] %v1214
      %1439 = vst [vmem:[%s172 + $0x270] sm:$0xff] %v1219
      %1440 = vst [vmem:[%s172 + $0x278] sm:$0xff] %v1222
      %1441 = vst [vmem:[%s172 + $0x280] sm:$0xff] %v1227
      %1442 = vst [vmem:[%s172 + $0x288] sm:$0xff] %v1230
      %1443 = vst [vmem:[%s172 + $0x290] sm:$0xff] %v1235
      %1444 = vst [vmem:[%s172 + $0x298] sm:$0xff] %v1238
      %1445 = vst [vmem:[%s172 + $0x2a0] sm:$0xff] %v1243
      %1446 = vst [vmem:[%s172 + $0x2a8] sm:$0xff] %v1246
      %1447 = vst [vmem:[%s172 + $0x2b0] sm:$0xff] %v1251
      %1448 = vst [vmem:[%s172 + $0x2b8] sm:$0xff] %v1254
      %1449 = vst [vmem:[%s172 + $0x2c0] sm:$0xff] %v1259
      %1450 = vst [vmem:[%s172 + $0x2c8] sm:$0xff] %v1262
      %1451 = vst [vmem:[%s172 + $0x2d0] sm:$0xff] %v1267
      %1452 = vst [vmem:[%s172 + $0x2d8] sm:$0xff] %v1270
      %1453 = vst [vmem:[%s172 + $0x2e0] sm:$0xff] %v1275
      %1454 = vst [vmem:[%s172 + $0x2e8] sm:$0xff] %v1278
      %1455 = vst [vmem:[%s172 + $0x2f0] sm:$0xff] %v1283
      %1456 = vst [vmem:[%s172 + $0x2f8] sm:$0xff] %v1286
      %1457 = vst [vmem:[%s172 + $0x300] sm:$0xff] %v1291
      %1458 = vst [vmem:[%s172 + $0x308] sm:$0xff] %v1294
      %1459 = vst [vmem:[%s172 + $0x310] sm:$0xff] %v1299
      %1460 = vst [vmem:[%s172 + $0x318] sm:$0xff] %v1302
      %1461 = vst [vmem:[%s172 + $0x320] sm:$0xff] %v1307
      %1462 = vst [vmem:[%s172 + $0x328] sm:$0xff] %v1310
      %1463 = vst [vmem:[%s172 + $0x330] sm:$0xff] %v1315
      %1464 = vst [vmem:[%s172 + $0x338] sm:$0xff] %v1318
      %1465 = vst [vmem:[%s172 + $0x340] sm:$0xff] %v1323
      %1466 = vst [vmem:[%s172 + $0x348] sm:$0xff] %v1326
      %1467 = vst [vmem:[%s172 + $0x350] sm:$0xff] %v1331
      %1468 = vst [vmem:[%s172 + $0x358] sm:$0xff] %v1334
      %1469 = vst [vmem:[%s172 + $0x360] sm:$0xff] %v1339
      %1470 = vst [vmem:[%s172 + $0x368] sm:$0xff] %v1342
      %1471 = vst [vmem:[%s172 + $0x370] sm:$0xff] %v1347
      %1472 = vst [vmem:[%s172 + $0x378] sm:$0xff] %v1350
      %1473 = vst [vmem:[%s172 + $0x380] sm:$0xff] %v1355
      %1474 = vst [vmem:[%s172 + $0x388] sm:$0xff] %v1358
      %s1475 = smul.u32 114, %s14
      %p1476 = scmp.lt.s32.totalorder %s1475, 227
      %s1477 = scalar_select %p1476, %s1475, 227
      %s1478 = smul.addr %s1477, 8
      %s1479 = scalar_lea.vmem %s3, %s1478
      // Predicated region
      $region33: #{pixel_decoder_forward.7} parent=31 // pred_check
        %p1480 = pneg %p100
      $region34: #{pixel_decoder_forward.7} parent=31 // pred_check_branch
        %1482 = sbr.rel (%p1480) target = $region36
      $region35: #{pixel_decoder_forward.7} parent=31 // pred_region
        %s1483 = smul.u32 114, %s14
      $region36: #{pixel_decoder_forward.7} parent=31 // pred_fallthru
        _
    $region32: #{pixel_decoder_forward.7} parent=5 // pred_fallthru
      _
    %p1484 = scmp.le.s32.totalorder 2, %s9
    // Predicated region
    $region37: #{pixel_decoder_forward.7} parent=5 // pred_check
      %p1485 = pneg %p1484
    $region38: #{pixel_decoder_forward.7} parent=5 // pred_check_branch
      %1487 = sbr.rel (%p1485) target = $region40
    $region39: #{pixel_decoder_forward.7} parent=5 // pred_region
      %s1488 = ssub.s32 %s9, 2
      // Predicated region
      $region41: #{pixel_decoder_forward.7} parent=39 // pred_check
        %p1489 = pneg %p106
      $region42: #{pixel_decoder_forward.7} parent=39 // pred_check_branch
        %1491 = sbr.rel (%p1489) target = $region44
      $region43: #{pixel_decoder_forward.7} parent=39 // pred_region
        %s1492 = smul.u32 114, %s15
        %p1493 = scmp.lt.s32.totalorder %s1492, 227
        %s1494 = scalar_select %p1493, %s1492, 227
        %s1495 = smul.addr %s1494, 8
        %s1496 = scalar_lea.vmem %s3, %s1495
      $region44: #{pixel_decoder_forward.7} parent=39 // pred_fallthru
        _
    $region40: #{pixel_decoder_forward.7} parent=5 // pred_fallthru
      _
  $region6: #{pixel_decoder_forward.7} parent=0 // loop_footer
    %s13 = sadd.s32 1, %s9
  $region7: #{pixel_decoder_forward.7} parent=0 // loop_footer_branch
    %8 = sbr.rel target = $region3
  $region8: #{pixel_decoder_forward.7} parent=0 // loop_exit
    _

</llo_original>
